<compile_context>
chip_gen: v6e
topology: v6e:2x2x1
jax: 0.10.0
libtpu: 0.0.40
codegen_flags: <defaults>
</compile_context>

<pallas_src>
import functools

import jax
import jax.numpy as jnp
from jax.experimental import pallas as pl
from jax.experimental.pallas import tpu as pltpu

LANE = 128  # last-dim (lane) tiling


def _round_up(x, m):
    return ((x + m - 1) // m) * m


def _mlp_kernel(*refs, num_layers):
    """Fused MLP over one batch tile.

    refs = (x_ref, w0, b0, ..., w_{L-1}, b_{L-1}, o_ref, h_scratch)
      x_ref : (bm, input_dim)            f32 (cast to compute dtype in-kernel)
      w_i   : (K_i, N_i_pad)             compute dtype (bf16 by default)
      b_i   : (1, N_i_pad)               f32
      o_ref : (bm, out_pad)              f32
      h_scratch : (bm, max_hidden_pad)   compute dtype (VMEM activation staging)
    """
    x_ref = refs[0]
    o_ref = refs[1 + 2 * num_layers]
    h_ref = refs[2 + 2 * num_layers]
    wb = refs[1:1 + 2 * num_layers]

    compute_dtype = wb[0].dtype
    h = x_ref[...].astype(compute_dtype)          # free VPU cast, no HBM cost
    for i in range(num_layers):
        w = wb[2 * i][...]
        b = wb[2 * i + 1][...]
        # bf16 x bf16 MXU matmul, f32 accumulation; bias/ReLU epilogue in f32.
        y = jnp.dot(h, w, preferred_element_type=jnp.float32) + b
        if i < num_layers - 1:
            y = jnp.maximum(y, 0.0)
            n = w.shape[1]                        # 128-aligned -> aligned slice
            # Stage the activation through VMEM scratch to bound liveness
            # across the unrolled layer loop (keeps vreg pressure predictable).
            h_ref[:, :n] = y.astype(compute_dtype)
            h = h_ref[:, :n]
        else:
            o_ref[...] = y.astype(o_ref.dtype)


def init_mlp_params(key, input_dim, hidden_layers, output_dim,
                    param_dtype=jnp.bfloat16):
    """torch.nn.Linear-style init (uniform +-1/sqrt(fan_in)).

    Weights are stored (in_features, out_features).  Hidden/output feature
    dims are zero-padded to multiples of 128 (lane-dense); the first layer's
    K stays unpadded so x never needs host-side padding.  Biases stay f32.
    """
    assert isinstance(hidden_layers, list) and len(hidden_layers) > 0, (
        "hidden_layers must be a non-empty list")
    dims = [input_dim] + list(hidden_layers) + [output_dim]
    dims_pad = [input_dim] + [_round_up(d, LANE) for d in dims[1:]]

    weights, biases = [], []
    for i, (fan_in, fan_out) in enumerate(zip(dims[:-1], dims[1:])):
        key, kw, kb = jax.random.split(key, 3)
        bound = 1.0 / float(fan_in) ** 0.5
        w = jax.random.uniform(kw, (fan_in, fan_out), jnp.float32, -bound, bound)
        b = jax.random.uniform(kb, (1, fan_out), jnp.float32, -bound, bound)
        kp, np_ = dims_pad[i], dims_pad[i + 1]
        w_pad = jnp.zeros((kp, np_), jnp.float32).at[:fan_in, :fan_out].set(w)
        b_pad = jnp.zeros((1, np_), jnp.float32).at[:, :fan_out].set(b)
        weights.append(w_pad.astype(param_dtype))
        biases.append(b_pad)                      # f32 epilogue
    return {"weights": weights, "biases": biases,
            "dims": dims, "dims_pad": dims_pad}


def mlp_relu_forward(x, params):
    """x: (B, input_dim) f32 -> (B, output_dim) f32.  One fused pallas_call."""
    weights, biases = params["weights"], params["biases"]
    dims, dims_pad = params["dims"], params["dims_pad"]
    num_layers = len(weights)

    B, in_dim = x.shape
    assert in_dim == dims[0]
    out_dim, out_pad = dims[-1], dims_pad[-1]
    hidden_pad_max = max(dims_pad[1:-1])
    compute_dtype = weights[0].dtype
    c_item = jnp.dtype(compute_dtype).itemsize
    x_item = jnp.dtype(x.dtype).itemsize

    # ---- per-generation VMEM budget -------------------------------------
    try:
        vmem_cap = int(pltpu.get_tpu_info().vmem_capacity_bytes)
    except Exception:
        vmem_cap = 64 * 1024 * 1024            # conservative (v7x per-TC)
    vmem_budget = int(0.75 * vmem_cap)

    param_bytes = (sum(w.size * w.dtype.itemsize for w in weights)
                   + sum(b.size * b.dtype.itemsize for b in biases))
    # Per-batch-row VMEM: double-buffered x block + double-buffered out block
    # + activation scratch + live f32 intermediates.
    per_row = (2 * in_dim * x_item + 2 * out_pad * 4
               + hidden_pad_max * c_item + 2 * max(dims_pad) * 4)

    # dtype-dependent sublane packing (whole packed vregs for the bf16 scratch)
    pack = 16 if c_item == 2 else (32 if c_item == 1 else 8)

    bm = 512                                   # shrink only if VMEM-constrained
    while bm > pack and param_bytes + bm * per_row > vmem_budget:
        bm //= 2
    bm = min(bm, _round_up(B, pack))
    if B >= 2 * pack:                          # >=2 grid steps -> both v7x TCs busy
        bm = min(bm, _round_up(pl.cdiv(B, 2), pack))
    bm = max(pack, _round_up(bm, pack))
    grid = (pl.cdiv(B, bm),)                   # partial last block masked by Pallas

    vmem_limit = int(min(int(0.9 * vmem_cap),
                         max(2 * param_bytes + 2 * bm * per_row,
                             32 * 1024 * 1024)))

    flops = 2 * B * sum(dims_pad[i] * dims_pad[i + 1] for i in range(num_layers))
    bytes_accessed = int(x.size * x_item + param_bytes + B * out_pad * 4)
    cost = pl.CostEstimate(flops=flops, transcendentals=0,
                           bytes_accessed=bytes_accessed)

    kernel = functools.partial(_mlp_kernel, num_layers=num_layers)
    x_spec = pl.BlockSpec((bm, in_dim), lambda i: (i, 0))
    out_spec = pl.BlockSpec((bm, out_pad), lambda i: (i, 0))
    out_shape = jax.ShapeDtypeStruct((B, out_pad), jnp.float32)

    def run(single_buffer_params):
        in_specs = [x_spec]
        operands = [x]
        for w, b in zip(weights, biases):
            if single_buffer_params:
                # Grid-invariant params: fetched once, never re-fetched ->
                # single buffer halves their resident VMEM footprint.
                w_spec = pl.BlockSpec(w.shape, lambda i: (0, 0),
                                      pipeline_mode=pl.Buffered(1))
                b_spec = pl.BlockSpec(b.shape, lambda i: (0, 0),
                                      pipeline_mode=pl.Buffered(1))
            else:
                w_spec = pl.BlockSpec(w.shape, lambda i: (0, 0))
                b_spec = pl.BlockSpec(b.shape, lambda i: (0, 0))
            in_specs += [w_spec, b_spec]
            operands += [w, b]
        return pl.pallas_call(
            kernel,
            out_shape=out_shape,
            grid=grid,
            in_specs=in_specs,
            out_specs=out_spec,
            scratch_shapes=[pltpu.VMEM((bm, hidden_pad_max), compute_dtype)],
            compiler_params=pltpu.CompilerParams(
                dimension_semantics=("parallel",),
                vmem_limit_bytes=vmem_limit,
            ),
            cost_estimate=cost,
        )(*operands)

    try:
        out = jax.block_until_ready(run(True))
    except Exception:
        # Buffered(1) unsupported on this JAX build -> default double-buffering.
        out = run(False)

    if out_pad != out_dim:                      # skip slice when 128-aligned
        out = out[:, :out_dim]
    return out


def _reference_forward(x, params):
    """Pure-JAX reference mimicking the kernel's bf16 MXU inputs / f32 acc."""
    dims = params["dims"]
    n = len(params["weights"])
    h = x.astype(jnp.float32)
    for i, (w, b) in enumerate(zip(params["weights"], params["biases"])):
        fi, fo = dims[i], dims[i + 1]
        if w.dtype != jnp.float32:
            h = h.astype(w.dtype).astype(jnp.float32)   # same bf16 rounding as kernel
        h = h @ w[:fi, :fo].astype(jnp.float32) + b[:, :fo]
        if i < n - 1:
            h = jnp.maximum(h, 0.0)
    return h


if __name__ == "__main__":
    key = jax.random.PRNGKey(0)

    batch = 32
    input_dim = 32
    hidden_layers = [64, 32]
    output_dim = 16

    key, kx, kp = jax.random.split(key, 3)
    x = jax.random.normal(kx, (batch, input_dim), jnp.float32)
    # bf16 weights by default (bf16-native MXUs); pass param_dtype=jnp.float32
    # to init_mlp_params for a strict-f32 path.
    params = init_mlp_params(kp, input_dim, hidden_layers, output_dim)

    out = mlp_relu_forward(x, params)
    out = jax.block_until_ready(out)

    ref = _reference_forward(x, params)
    assert out.shape == (batch, output_dim)
    # Reference uses identical bf16 inputs; only f32 summation order differs.
    assert jnp.allclose(out, ref, atol=5e-3, rtol=5e-3), "mismatch vs reference"

    print("KERNEL_OK")
</pallas_src>

<mosaic_0001>
module attributes {stable_mosaic.version = 11 : i64} {
  func.func @_mlp_kernel(%arg0: i32, %arg1: memref<16x32xf32, #tpu.memory_space<vmem>>, %arg2: memref<32x128xbf16, #tpu.memory_space<vmem>>, %arg3: memref<1x128xf32, #tpu.memory_space<vmem>>, %arg4: memref<128x128xbf16, #tpu.memory_space<vmem>>, %arg5: memref<1x128xf32, #tpu.memory_space<vmem>>, %arg6: memref<128x128xbf16, #tpu.memory_space<vmem>>, %arg7: memref<1x128xf32, #tpu.memory_space<vmem>>, %arg8: memref<16x128xf32, #tpu.memory_space<vmem>>, %arg9: memref<16x128xbf16, #tpu.memory_space<vmem>>) attributes {dimension_semantics = [#tpu.dimension_semantics<parallel>], iteration_bounds = array<i64: 2>, scalar_prefetch = 0 : i64, scratch_operands = 1 : i64, tpu.core_type = #tpu.core_type<tc>, window_params = [{transform_indices = @transform_0, window_bounds = array<i64: 16, 32>}, {pipeline_mode = #tpu.pipeline_mode<synchronous>, transform_indices = @transform_1, window_bounds = array<i64: 32, 128>}, {pipeline_mode = #tpu.pipeline_mode<synchronous>, transform_indices = @transform_2, window_bounds = array<i64: 1, 128>}, {pipeline_mode = #tpu.pipeline_mode<synchronous>, transform_indices = @transform_3, window_bounds = array<i64: 128, 128>}, {pipeline_mode = #tpu.pipeline_mode<synchronous>, transform_indices = @transform_4, window_bounds = array<i64: 1, 128>}, {pipeline_mode = #tpu.pipeline_mode<synchronous>, transform_indices = @transform_5, window_bounds = array<i64: 128, 128>}, {pipeline_mode = #tpu.pipeline_mode<synchronous>, transform_indices = @transform_6, window_bounds = array<i64: 1, 128>}, {transform_indices = @transform_7, window_bounds = array<i64: 16, 128>}]} {
    %c0 = arith.constant 0 : index
    %c0_0 = arith.constant 0 : index
    %0 = vector.load %arg1[%c0, %c0_0] : memref<16x32xf32, #tpu.memory_space<vmem>>, vector<16x32xf32>
    %1 = arith.truncf %0 : vector<16x32xf32> to vector<16x32xbf16>
    %c0_1 = arith.constant 0 : index
    %c0_2 = arith.constant 0 : index
    %2 = vector.load %arg2[%c0_1, %c0_2] : memref<32x128xbf16, #tpu.memory_space<vmem>>, vector<32x128xbf16>
    %c0_3 = arith.constant 0 : index
    %c0_4 = arith.constant 0 : index
    %3 = vector.load %arg3[%c0_3, %c0_4] : memref<1x128xf32, #tpu.memory_space<vmem>>, vector<1x128xf32>
    %cst = arith.constant dense<0.000000e+00> : vector<16x128xf32>
    %4 = tpu.matmul %1, %2, %cst {dimension_numbers = #tpu.dot_dimension_numbers<[1], [0], [0], [1], [0, 0, 1, 1], [], []>} : vector<16x32xbf16>, vector<32x128xbf16>, vector<16x128xf32> -> vector<16x128xf32>
    %5 = vector.broadcast %3 : vector<1x128xf32> to vector<16x128xf32>
    %6 = arith.addf %4, %5 : vector<16x128xf32>
    %cst_5 = arith.constant 0.000000e+00 : f32
    %7 = vector.broadcast %cst_5 : f32 to vector<16x128xf32>
    %8 = arith.maximumf %6, %7 : vector<16x128xf32>
    %9 = arith.truncf %8 : vector<16x128xf32> to vector<16x128xbf16>
    %c0_6 = arith.constant 0 : index
    %c0_7 = arith.constant 0 : index
    %10 = vector.load %arg9[%c0_6, %c0_7] : memref<16x128xbf16, #tpu.memory_space<vmem>>, vector<16x128xbf16>
    tpu.vector_store %arg9[%c0_6, %c0_7], %9 {strides = array<i32>} : memref<16x128xbf16, #tpu.memory_space<vmem>>, vector<16x128xbf16>,
    %c0_8 = arith.constant 0 : index
    %c0_9 = arith.constant 0 : index
    %11 = vector.load %arg9[%c0_8, %c0_9] : memref<16x128xbf16, #tpu.memory_space<vmem>>, vector<16x128xbf16>
    %c0_10 = arith.constant 0 : index
    %c0_11 = arith.constant 0 : index
    %12 = vector.load %arg4[%c0_10, %c0_11] : memref<128x128xbf16, #tpu.memory_space<vmem>>, vector<128x128xbf16>
    %c0_12 = arith.constant 0 : index
    %c0_13 = arith.constant 0 : index
    %13 = vector.load %arg5[%c0_12, %c0_13] : memref<1x128xf32, #tpu.memory_space<vmem>>, vector<1x128xf32>
    %cst_14 = arith.constant dense<0.000000e+00> : vector<16x128xf32>
    %14 = tpu.matmul %11, %12, %cst_14 {dimension_numbers = #tpu.dot_dimension_numbers<[1], [0], [0], [1], [0, 0, 1, 1], [], []>} : vector<16x128xbf16>, vector<128x128xbf16>, vector<16x128xf32> -> vector<16x128xf32>
    %15 = vector.broadcast %13 : vector<1x128xf32> to vector<16x128xf32>
    %16 = arith.addf %14, %15 : vector<16x128xf32>
    %cst_15 = arith.constant 0.000000e+00 : f32
    %17 = vector.broadcast %cst_15 : f32 to vector<16x128xf32>
    %18 = arith.maximumf %16, %17 : vector<16x128xf32>
    %19 = arith.truncf %18 : vector<16x128xf32> to vector<16x128xbf16>
    %c0_16 = arith.constant 0 : index
    %c0_17 = arith.constant 0 : index
    %20 = vector.load %arg9[%c0_16, %c0_17] : memref<16x128xbf16, #tpu.memory_space<vmem>>, vector<16x128xbf16>
    tpu.vector_store %arg9[%c0_16, %c0_17], %19 {strides = array<i32>} : memref<16x128xbf16, #tpu.memory_space<vmem>>, vector<16x128xbf16>,
    %c0_18 = arith.constant 0 : index
    %c0_19 = arith.constant 0 : index
    %21 = vector.load %arg9[%c0_18, %c0_19] : memref<16x128xbf16, #tpu.memory_space<vmem>>, vector<16x128xbf16>
    %c0_20 = arith.constant 0 : index
    %c0_21 = arith.constant 0 : index
    %22 = vector.load %arg6[%c0_20, %c0_21] : memref<128x128xbf16, #tpu.memory_space<vmem>>, vector<128x128xbf16>
    %c0_22 = arith.constant 0 : index
    %c0_23 = arith.constant 0 : index
    %23 = vector.load %arg7[%c0_22, %c0_23] : memref<1x128xf32, #tpu.memory_space<vmem>>, vector<1x128xf32>
    %cst_24 = arith.constant dense<0.000000e+00> : vector<16x128xf32>
    %24 = tpu.matmul %21, %22, %cst_24 {dimension_numbers = #tpu.dot_dimension_numbers<[1], [0], [0], [1], [0, 0, 1, 1], [], []>} : vector<16x128xbf16>, vector<128x128xbf16>, vector<16x128xf32> -> vector<16x128xf32>
    %25 = vector.broadcast %23 : vector<1x128xf32> to vector<16x128xf32>
    %26 = arith.addf %24, %25 : vector<16x128xf32>
    %c0_25 = arith.constant 0 : index
    %c0_26 = arith.constant 0 : index
    %27 = vector.load %arg8[%c0_25, %c0_26] : memref<16x128xf32, #tpu.memory_space<vmem>>, vector<16x128xf32>
    tpu.vector_store %arg8[%c0_25, %c0_26], %26 {strides = array<i32>} : memref<16x128xf32, #tpu.memory_space<vmem>>, vector<16x128xf32>,
    return
  }
  func.func @transform_0(%arg0: i32) -> (i32, i32) {
    %c0_i32 = arith.constant 0 : i32
    %c0_i32_0 = arith.constant 0 : i32
    return %arg0, %c0_i32 : i32, i32
  }
  func.func @transform_1(%arg0: i32) -> (i32, i32) {
    %c0_i32 = arith.constant 0 : i32
    %c0_i32_0 = arith.constant 0 : i32
    %c0_i32_1 = arith.constant 0 : i32
    return %c0_i32, %c0_i32_0 : i32, i32
  }
  func.func @transform_2(%arg0: i32) -> (i32, i32) {
    %c0_i32 = arith.constant 0 : i32
    %c0_i32_0 = arith.constant 0 : i32
    %c0_i32_1 = arith.constant 0 : i32
    return %c0_i32, %c0_i32_0 : i32, i32
  }
  func.func @transform_3(%arg0: i32) -> (i32, i32) {
    %c0_i32 = arith.constant 0 : i32
    %c0_i32_0 = arith.constant 0 : i32
    %c0_i32_1 = arith.constant 0 : i32
    return %c0_i32, %c0_i32_0 : i32, i32
  }
  func.func @transform_4(%arg0: i32) -> (i32, i32) {
    %c0_i32 = arith.constant 0 : i32
    %c0_i32_0 = arith.constant 0 : i32
    %c0_i32_1 = arith.constant 0 : i32
    return %c0_i32, %c0_i32_0 : i32, i32
  }
  func.func @transform_5(%arg0: i32) -> (i32, i32) {
    %c0_i32 = arith.constant 0 : i32
    %c0_i32_0 = arith.constant 0 : i32
    %c0_i32_1 = arith.constant 0 : i32
    return %c0_i32, %c0_i32_0 : i32, i32
  }
  func.func @transform_6(%arg0: i32) -> (i32, i32) {
    %c0_i32 = arith.constant 0 : i32
    %c0_i32_0 = arith.constant 0 : i32
    %c0_i32_1 = arith.constant 0 : i32
    return %c0_i32, %c0_i32_0 : i32, i32
  }
  func.func @transform_7(%arg0: i32) -> (i32, i32) {
    %c0_i32 = arith.constant 0 : i32
    %c0_i32_0 = arith.constant 0 : i32
    return %arg0, %c0_i32 : i32, i32
  }
}

module attributes {stable_mosaic.version = 11 : i64} {
  func.func @_mlp_kernel(%arg0: i32, %arg1: memref<16x32xf32, #tpu.memory_space<vmem>>, %arg2: memref<32x128xbf16, #tpu.memory_space<vmem>>, %arg3: memref<1x128xf32, #tpu.memory_space<vmem>>, %arg4: memref<128x128xbf16, #tpu.memory_space<vmem>>, %arg5: memref<1x128xf32, #tpu.memory_space<vmem>>, %arg6: memref<128x128xbf16, #tpu.memory_space<vmem>>, %arg7: memref<1x128xf32, #tpu.memory_space<vmem>>, %arg8: memref<16x128xf32, #tpu.memory_space<vmem>>, %arg9: memref<16x128xbf16, #tpu.memory_space<vmem>>) attributes {dimension_semantics = [#tpu.dimension_semantics<parallel>], iteration_bounds = array<i64: 2>, scalar_prefetch = 0 : i64, scratch_operands = 1 : i64, tpu.core_type = #tpu.core_type<tc>, window_params = [{transform_indices = @transform_0, window_bounds = array<i64: 16, 32>}, {pipeline_mode = #tpu.pipeline_mode<synchronous>, transform_indices = @transform_1, window_bounds = array<i64: 32, 128>}, {pipeline_mode = #tpu.pipeline_mode<synchronous>, transform_indices = @transform_2, window_bounds = array<i64: 1, 128>}, {pipeline_mode = #tpu.pipeline_mode<synchronous>, transform_indices = @transform_3, window_bounds = array<i64: 128, 128>}, {pipeline_mode = #tpu.pipeline_mode<synchronous>, transform_indices = @transform_4, window_bounds = array<i64: 1, 128>}, {pipeline_mode = #tpu.pipeline_mode<synchronous>, transform_indices = @transform_5, window_bounds = array<i64: 128, 128>}, {pipeline_mode = #tpu.pipeline_mode<synchronous>, transform_indices = @transform_6, window_bounds = array<i64: 1, 128>}, {transform_indices = @transform_7, window_bounds = array<i64: 16, 128>}]} {
    %c0 = arith.constant 0 : index
    %c0_0 = arith.constant 0 : index
    %0 = vector.load %arg1[%c0, %c0_0] : memref<16x32xf32, #tpu.memory_space<vmem>>, vector<16x32xf32>
    %1 = arith.truncf %0 : vector<16x32xf32> to vector<16x32xbf16>
    %c0_1 = arith.constant 0 : index
    %c0_2 = arith.constant 0 : index
    %2 = vector.load %arg2[%c0_1, %c0_2] : memref<32x128xbf16, #tpu.memory_space<vmem>>, vector<32x128xbf16>
    %c0_3 = arith.constant 0 : index
    %c0_4 = arith.constant 0 : index
    %3 = vector.load %arg3[%c0_3, %c0_4] : memref<1x128xf32, #tpu.memory_space<vmem>>, vector<1x128xf32>
    %cst = arith.constant dense<0.000000e+00> : vector<16x128xf32>
    %4 = tpu.matmul %1, %2, %cst {dimension_numbers = #tpu.dot_dimension_numbers<[1], [0], [0], [1], [0, 0, 1, 1], [], []>} : vector<16x32xbf16>, vector<32x128xbf16>, vector<16x128xf32> -> vector<16x128xf32>
    %5 = vector.broadcast %3 : vector<1x128xf32> to vector<16x128xf32>
    %6 = arith.addf %4, %5 : vector<16x128xf32>
    %cst_5 = arith.constant 0.000000e+00 : f32
    %7 = vector.broadcast %cst_5 : f32 to vector<16x128xf32>
    %8 = arith.maximumf %6, %7 : vector<16x128xf32>
    %9 = arith.truncf %8 : vector<16x128xf32> to vector<16x128xbf16>
    %c0_6 = arith.constant 0 : index
    %c0_7 = arith.constant 0 : index
    %10 = vector.load %arg9[%c0_6, %c0_7] : memref<16x128xbf16, #tpu.memory_space<vmem>>, vector<16x128xbf16>
    tpu.vector_store %arg9[%c0_6, %c0_7], %9 {strides = array<i32>} : memref<16x128xbf16, #tpu.memory_space<vmem>>, vector<16x128xbf16>,
    %c0_8 = arith.constant 0 : index
    %c0_9 = arith.constant 0 : index
    %11 = vector.load %arg9[%c0_8, %c0_9] : memref<16x128xbf16, #tpu.memory_space<vmem>>, vector<16x128xbf16>
    %c0_10 = arith.constant 0 : index
    %c0_11 = arith.constant 0 : index
    %12 = vector.load %arg4[%c0_10, %c0_11] : memref<128x128xbf16, #tpu.memory_space<vmem>>, vector<128x128xbf16>
    %c0_12 = arith.constant 0 : index
    %c0_13 = arith.constant 0 : index
    %13 = vector.load %arg5[%c0_12, %c0_13] : memref<1x128xf32, #tpu.memory_space<vmem>>, vector<1x128xf32>
    %cst_14 = arith.constant dense<0.000000e+00> : vector<16x128xf32>
    %14 = tpu.matmul %11, %12, %cst_14 {dimension_numbers = #tpu.dot_dimension_numbers<[1], [0], [0], [1], [0, 0, 1, 1], [], []>} : vector<16x128xbf16>, vector<128x128xbf16>, vector<16x128xf32> -> vector<16x128xf32>
    %15 = vector.broadcast %13 : vector<1x128xf32> to vector<16x128xf32>
    %16 = arith.addf %14, %15 : vector<16x128xf32>
    %cst_15 = arith.constant 0.000000e+00 : f32
    %17 = vector.broadcast %cst_15 : f32 to vector<16x128xf32>
    %18 = arith.maximumf %16, %17 : vector<16x128xf32>
    %19 = arith.truncf %18 : vector<16x128xf32> to vector<16x128xbf16>
    %c0_16 = arith.constant 0 : index
    %c0_17 = arith.constant 0 : index
    %20 = vector.load %arg9[%c0_16, %c0_17] : memref<16x128xbf16, #tpu.memory_space<vmem>>, vector<16x128xbf16>
    tpu.vector_store %arg9[%c0_16, %c0_17], %19 {strides = array<i32>} : memref<16x128xbf16, #tpu.memory_space<vmem>>, vector<16x128xbf16>,
    %c0_18 = arith.constant 0 : index
    %c0_19 = arith.constant 0 : index
    %21 = vector.load %arg9[%c0_18, %c0_19] : memref<16x128xbf16, #tpu.memory_space<vmem>>, vector<16x128xbf16>
    %c0_20 = arith.constant 0 : index
    %c0_21 = arith.constant 0 : index
    %22 = vector.load %arg6[%c0_20, %c0_21] : memref<128x128xbf16, #tpu.memory_space<vmem>>, vector<128x128xbf16>
    %c0_22 = arith.constant 0 : index
    %c0_23 = arith.constant 0 : index
    %23 = vector.load %arg7[%c0_22, %c0_23] : memref<1x128xf32, #tpu.memory_space<vmem>>, vector<1x128xf32>
    %cst_24 = arith.constant dense<0.000000e+00> : vector<16x128xf32>
    %24 = tpu.matmul %21, %22, %cst_24 {dimension_numbers = #tpu.dot_dimension_numbers<[1], [0], [0], [1], [0, 0, 1, 1], [], []>} : vector<16x128xbf16>, vector<128x128xbf16>, vector<16x128xf32> -> vector<16x128xf32>
    %25 = vector.broadcast %23 : vector<1x128xf32> to vector<16x128xf32>
    %26 = arith.addf %24, %25 : vector<16x128xf32>
    %c0_25 = arith.constant 0 : index
    %c0_26 = arith.constant 0 : index
    %27 = vector.load %arg8[%c0_25, %c0_26] : memref<16x128xf32, #tpu.memory_space<vmem>>, vector<16x128xf32>
    tpu.vector_store %arg8[%c0_25, %c0_26], %26 {strides = array<i32>} : memref<16x128xf32, #tpu.memory_space<vmem>>, vector<16x128xf32>,
    return
  }
  func.func @transform_0(%arg0: i32) -> (i32, i32) {
    %c0_i32 = arith.constant 0 : i32
    %c0_i32_0 = arith.constant 0 : i32
    return %arg0, %c0_i32 : i32, i32
  }
  func.func @transform_1(%arg0: i32) -> (i32, i32) {
    %c0_i32 = arith.constant 0 : i32
    %c0_i32_0 = arith.constant 0 : i32
    %c0_i32_1 = arith.constant 0 : i32
    return %c0_i32, %c0_i32_0 : i32, i32
  }
  func.func @transform_2(%arg0: i32) -> (i32, i32) {
    %c0_i32 = arith.constant 0 : i32
    %c0_i32_0 = arith.constant 0 : i32
    %c0_i32_1 = arith.constant 0 : i32
    return %c0_i32, %c0_i32_0 : i32, i32
  }
  func.func @transform_3(%arg0: i32) -> (i32, i32) {
    %c0_i32 = arith.constant 0 : i32
    %c0_i32_0 = arith.constant 0 : i32
    %c0_i32_1 = arith.constant 0 : i32
    return %c0_i32, %c0_i32_0 : i32, i32
  }
  func.func @transform_4(%arg0: i32) -> (i32, i32) {
    %c0_i32 = arith.constant 0 : i32
    %c0_i32_0 = arith.constant 0 : i32
    %c0_i32_1 = arith.constant 0 : i32
    return %c0_i32, %c0_i32_0 : i32, i32
  }
  func.func @transform_5(%arg0: i32) -> (i32, i32) {
    %c0_i32 = arith.constant 0 : i32
    %c0_i32_0 = arith.constant 0 : i32
    %c0_i32_1 = arith.constant 0 : i32
    return %c0_i32, %c0_i32_0 : i32, i32
  }
  func.func @transform_6(%arg0: i32) -> (i32, i32) {
    %c0_i32 = arith.constant 0 : i32
    %c0_i32_0 = arith.constant 0 : i32
    %c0_i32_1 = arith.constant 0 : i32
    return %c0_i32, %c0_i32_0 : i32, i32
  }
  func.func @transform_7(%arg0: i32) -> (i32, i32) {
    %c0_i32 = arith.constant 0 : i32
    %c0_i32_0 = arith.constant 0 : i32
    return %arg0, %c0_i32 : i32, i32
  }
}

</mosaic_0001>

<llo_original>
// kernel: tpu_custom_call.1
$region0: #{tpu_custom_call.1}
  #allocation0 [shape = 'u32[]', space=smem, size = 0x4, offset = 0x4, fixed_abs, tag = 'smem constant byte address 0x4 - core index']
  #allocation1 [shape = 'u32[144,128]{1,0:T(1,128)}', space=vmem, size = 0x12000, scoped, tag = 'internal scratch']
  #allocation2 [shape = 'bf16[16,128]{1,0:T(8,128)(2,1)}', space=vmem, size = 0x1000, scoped, tag = 'scratch operand']
  %s0 = inlined_call_operand.hbm [shape: f32[32,32], index: 0, kind: input, shape index: {}]
  %s1 = inlined_call_operand.hbm [shape: bf16[32,128], index: 1, kind: input, shape index: {}]
  %s2 = inlined_call_operand.vmem [shape: f32[1,128], index: 2, kind: input, shape index: {}]
  %s3 = inlined_call_operand.hbm [shape: bf16[128,128], index: 3, kind: input, shape index: {}]
  %s4 = inlined_call_operand.vmem [shape: f32[1,128], index: 4, kind: input, shape index: {}]
  %s5 = inlined_call_operand.hbm [shape: bf16[128,128], index: 5, kind: input, shape index: {}]
  %s6 = inlined_call_operand.vmem [shape: f32[1,128], index: 6, kind: input, shape index: {}]
  %s7 = inlined_call_operand.hbm [shape: f32[32,128], index: 7, kind: output, shape index: {}]
  %s8 = sld [smem:[#allocation0]]
  $region77: #{tpu_custom_call.1} parent=0
    _
  %s10 = ssub.s32 1, %s8
  %s11 = scalar_select 0, %s10, %s8
  $region1: #{tpu_custom_call.1} parent=0
    #allocation3 [shape = 'u8[16384]{0}', space=vmem, size = 0x4000, scoped, tag = 'input window, operand 0']
    #allocation4 [shape = 's32[2]{0}', space=sflag, size = 0x8, scoped, tag = 'scoped memory for tpu_custom_call.1']
    #allocation5 [shape = 's32[2]{0}', space=sflag, size = 0x8, scoped, tag = 'scoped memory for tpu_custom_call.1']
    #allocation6 [shape = 'u8[8192]{0}', space=vmem, size = 0x2000, scoped, tag = 'input window, operand 1, single buffered']
    #allocation7 [shape = 's32[1]{0}', space=sflag, size = 0x4, scoped, tag = 'scoped memory for tpu_custom_call.1']
    #allocation8 [shape = 'u8[32768]{0}', space=vmem, size = 0x8000, scoped, tag = 'input window, operand 3, single buffered']
    #allocation9 [shape = 'u8[32768]{0}', space=vmem, size = 0x8000, scoped, tag = 'input window, operand 5, single buffered']
    #allocation10 [shape = 's32[1]{0}', space=sflag, size = 0x4, scoped, tag = 'scoped memory for tpu_custom_call.1']
    #allocation11 [shape = 'u8[16384]{0}', space=vmem, size = 0x4000, scoped, tag = 'output window, operand 0']
    %12 = vsyncpa [#allocation4], 0
    %s13 = scalar_lea.sflag [#allocation4], 1
    %14 = vsyncpa %s13, 0
    %15 = vsyncpa [#allocation7], 0
    %16 = vsyncpa [#allocation10], 0
    %17 = vsyncpa [#allocation5], 0
    %s18 = scalar_lea.sflag [#allocation5], 1
    %19 = vsyncpa %s18, 0
    loop: start=0, step=1, limit=4
    $region2: #{tpu_custom_call.1} parent=1 // loop_pre_header
      _
    $region3: #{tpu_custom_call.1} parent=1 // loop_header
      %s21 = sphi 0, %s25
      %p22 = scmp.ge.s32.totalorder %s21, 4
      %s31 = sphi 0, %s33
      %s34 = sphi 0, %s31
      %s35 = sphi 0, %s34
      %s51 = sphi 0, %s35
      %s55 = sphi 0, %s55
      %s57 = sphi 0, %s55
      %s58 = sphi 0, %s57
      %s72 = sphi 0, %s58
      %s76 = sphi 0, %s76
      %s78 = sphi 0, %s76
      %s79 = sphi 0, %s78
      %s93 = sphi 0, %s79
      %s97 = sphi 0, %s97
      %s99 = sphi 0, %s97
      %s100 = sphi 0, %s99
      %s114 = sphi 0, %s100
      %s118 = sphi 0, %s118
      %s120 = sphi 0, %s118
      %s121 = sphi 0, %s120
      %s135 = sphi 0, %s121
      %s139 = sphi 0, %s139
      %s141 = sphi 0, %s139
      %s142 = sphi 0, %s141
      %s156 = sphi 0, %s142
      %s160 = sphi 0, %s160
      %s162 = sphi 0, %s160
      %s163 = sphi 0, %s162
      %s177 = sphi 0, %s163
      %s183 = sphi 0, %s185
      %s186 = sphi 0, %s183
      %s187 = sphi 0, %s186
      %s203 = sphi 0, %s187
    $region4: #{tpu_custom_call.1} parent=1 // loop_header_branch
      %24 = sbr.rel (%p22) target = $region8
    $region5: #{tpu_custom_call.1} parent=1 // loop_body
      %s26 = ssub.s32 %s21, 1
      %s27 = ssub.s32 %s21, 2
      %s28 = sadd.s32 %s21, 1
      %s29 = ssub.s32 %s21, %s28
      %p30 = scmp.eq.s32.totalorder %s29, 0
      %s32 = sadd.s32 %s31, 1
      %s33 = scalar_select %p30, %s31, %s32
      %p36 = pneg %p30
      %p37 = scmp.eq.s32.totalorder %s21, 1
      %p38 = por %p36, %p37
      %p39 = scmp.ne.s32.totalorder %s31, %s34
      %p40 = scmp.eq.s32.totalorder %s21, 0
      %p41 = por %p39, %p40
      %p42 = scmp.ne.s32.totalorder %s31, %s34
      %p43 = scmp.eq.s32.totalorder %s26, 1
      %p44 = por %p42, %p43
      %p45 = scmp.ne.s32.totalorder %s34, %s35
      %p46 = scmp.eq.s32.totalorder %s26, 0
      %p47 = por %p45, %p46
      %p48 = scmp.ne.s32.totalorder %s34, %s35
      %p49 = scmp.eq.s32.totalorder %s27, 1
      %p50 = por %p48, %p49
      %p52 = scmp.ne.s32.totalorder %s35, %s51
      %p53 = scmp.eq.s32.totalorder %s27, 0
      %p54 = por %p52, %p53
      %s56 = sadd.s32 %s55, 1
      %p59 = scmp.eq.s32.totalorder %s21, 1
      %p60 = scmp.ne.s32.totalorder %s55, %s57
      %p61 = scmp.eq.s32.totalorder %s21, 0
      %p62 = por %p60, %p61
      %p63 = scmp.ne.s32.totalorder %s55, %s57
      %p64 = scmp.eq.s32.totalorder %s26, 1
      %p65 = por %p63, %p64
      %p66 = scmp.ne.s32.totalorder %s57, %s58
      %p67 = scmp.eq.s32.totalorder %s26, 0
      %p68 = por %p66, %p67
      %p69 = scmp.ne.s32.totalorder %s57, %s58
      %p70 = scmp.eq.s32.totalorder %s27, 1
      %p71 = por %p69, %p70
      %p73 = scmp.ne.s32.totalorder %s58, %s72
      %p74 = scmp.eq.s32.totalorder %s27, 0
      %p75 = por %p73, %p74
      %s77 = sadd.s32 %s76, 1
      %p80 = scmp.eq.s32.totalorder %s21, 1
      %p81 = scmp.ne.s32.totalorder %s76, %s78
      %p82 = scmp.eq.s32.totalorder %s21, 0
      %p83 = por %p81, %p82
      %p84 = scmp.ne.s32.totalorder %s76, %s78
      %p85 = scmp.eq.s32.totalorder %s26, 1
      %p86 = por %p84, %p85
      %p87 = scmp.ne.s32.totalorder %s78, %s79
      %p88 = scmp.eq.s32.totalorder %s26, 0
      %p89 = por %p87, %p88
      %p90 = scmp.ne.s32.totalorder %s78, %s79
      %p91 = scmp.eq.s32.totalorder %s27, 1
      %p92 = por %p90, %p91
      %p94 = scmp.ne.s32.totalorder %s79, %s93
      %p95 = scmp.eq.s32.totalorder %s27, 0
      %p96 = por %p94, %p95
      %s98 = sadd.s32 %s97, 1
      %p101 = scmp.eq.s32.totalorder %s21, 1
      %p102 = scmp.ne.s32.totalorder %s97, %s99
      %p103 = scmp.eq.s32.totalorder %s21, 0
      %p104 = por %p102, %p103
      %p105 = scmp.ne.s32.totalorder %s97, %s99
      %p106 = scmp.eq.s32.totalorder %s26, 1
      %p107 = por %p105, %p106
      %p108 = scmp.ne.s32.totalorder %s99, %s100
      %p109 = scmp.eq.s32.totalorder %s26, 0
      %p110 = por %p108, %p109
      %p111 = scmp.ne.s32.totalorder %s99, %s100
      %p112 = scmp.eq.s32.totalorder %s27, 1
      %p113 = por %p111, %p112
      %p115 = scmp.ne.s32.totalorder %s100, %s114
      %p116 = scmp.eq.s32.totalorder %s27, 0
      %p117 = por %p115, %p116
      %s119 = sadd.s32 %s118, 1
      %p122 = scmp.eq.s32.totalorder %s21, 1
      %p123 = scmp.ne.s32.totalorder %s118, %s120
      %p124 = scmp.eq.s32.totalorder %s21, 0
      %p125 = por %p123, %p124
      %p126 = scmp.ne.s32.totalorder %s118, %s120
      %p127 = scmp.eq.s32.totalorder %s26, 1
      %p128 = por %p126, %p127
      %p129 = scmp.ne.s32.totalorder %s120, %s121
      %p130 = scmp.eq.s32.totalorder %s26, 0
      %p131 = por %p129, %p130
      %p132 = scmp.ne.s32.totalorder %s120, %s121
      %p133 = scmp.eq.s32.totalorder %s27, 1
      %p134 = por %p132, %p133
      %p136 = scmp.ne.s32.totalorder %s121, %s135
      %p137 = scmp.eq.s32.totalorder %s27, 0
      %p138 = por %p136, %p137
      %s140 = sadd.s32 %s139, 1
      %p143 = scmp.eq.s32.totalorder %s21, 1
      %p144 = scmp.ne.s32.totalorder %s139, %s141
      %p145 = scmp.eq.s32.totalorder %s21, 0
      %p146 = por %p144, %p145
      %p147 = scmp.ne.s32.totalorder %s139, %s141
      %p148 = scmp.eq.s32.totalorder %s26, 1
      %p149 = por %p147, %p148
      %p150 = scmp.ne.s32.totalorder %s141, %s142
      %p151 = scmp.eq.s32.totalorder %s26, 0
      %p152 = por %p150, %p151
      %p153 = scmp.ne.s32.totalorder %s141, %s142
      %p154 = scmp.eq.s32.totalorder %s27, 1
      %p155 = por %p153, %p154
      %p157 = scmp.ne.s32.totalorder %s142, %s156
      %p158 = scmp.eq.s32.totalorder %s27, 0
      %p159 = por %p157, %p158
      %s161 = sadd.s32 %s160, 1
      %p164 = scmp.eq.s32.totalorder %s21, 1
      %p165 = scmp.ne.s32.totalorder %s160, %s162
      %p166 = scmp.eq.s32.totalorder %s21, 0
      %p167 = por %p165, %p166
      %p168 = scmp.ne.s32.totalorder %s160, %s162
      %p169 = scmp.eq.s32.totalorder %s26, 1
      %p170 = por %p168, %p169
      %p171 = scmp.ne.s32.totalorder %s162, %s163
      %p172 = scmp.eq.s32.totalorder %s26, 0
      %p173 = por %p171, %p172
      %p174 = scmp.ne.s32.totalorder %s162, %s163
      %p175 = scmp.eq.s32.totalorder %s27, 1
      %p176 = por %p174, %p175
      %p178 = scmp.ne.s32.totalorder %s163, %s177
      %p179 = scmp.eq.s32.totalorder %s27, 0
      %p180 = por %p178, %p179
      %s181 = ssub.s32 %s21, %s28
      %p182 = scmp.eq.s32.totalorder %s181, 0
      %s184 = sadd.s32 %s183, 1
      %s185 = scalar_select %p182, %s183, %s184
      %p188 = pneg %p182
      %p189 = scmp.eq.s32.totalorder %s21, 1
      %p190 = por %p188, %p189
      %p191 = scmp.ne.s32.totalorder %s183, %s186
      %p192 = scmp.eq.s32.totalorder %s21, 0
      %p193 = por %p191, %p192
      %p194 = scmp.ne.s32.totalorder %s183, %s186
      %p195 = scmp.eq.s32.totalorder %s26, 1
      %p196 = por %p194, %p195
      %p197 = scmp.ne.s32.totalorder %s186, %s187
      %p198 = scmp.eq.s32.totalorder %s26, 0
      %p199 = por %p197, %p198
      %p200 = scmp.ne.s32.totalorder %s186, %s187
      %p201 = scmp.eq.s32.totalorder %s27, 1
      %p202 = por %p200, %p201
      %p204 = scmp.ne.s32.totalorder %s187, %s203
      %p205 = scmp.eq.s32.totalorder %s27, 0
      %p206 = por %p204, %p205
      %p207 = scmp.le.s32.totalorder 1, %s21
      %p208 = scmp.lt.s32.totalorder %s21, 3
      %p209 = pnand %p207, %p208
      %p210 = pneg %p209
      // Predicated region
      $region9: #{tpu_custom_call.1} parent=5 // pred_check
        _
      $region10: #{tpu_custom_call.1} parent=5 // pred_check_branch
        %212 = sbr.rel (%p209) target = $region12
      $region11: #{tpu_custom_call.1} parent=5 // pred_region
        %s213 = ssub.s32 %s21, 1
        // Predicated region
        $region13: #{tpu_custom_call.1} parent=11 // pred_check
          %p214 = pneg %p68
        $region14: #{tpu_custom_call.1} parent=11 // pred_check_branch
          %216 = sbr.rel (%p214) target = $region16
        $region15: #{tpu_custom_call.1} parent=11 // pred_region
          %s218 = ssub.s32 256, 256
          %219 = vsyncadd [#allocation7], %s218
          %s220 = sshll.u32 [#allocation6], 4
          %s221 = int_to_ptr.vmem [resolvable:$true] %s220
          %226 = dma.hbm_to_vmem [thread:$0]  %s1, 256, %s221, [#allocation7], 64, 64, 4
        $region16: #{tpu_custom_call.1} parent=11 // pred_fallthru
          _
        // Predicated region
        $region17: #{tpu_custom_call.1} parent=11 // pred_check
          %p227 = pneg %p89
        $region18: #{tpu_custom_call.1} parent=11 // pred_check_branch
          %229 = sbr.rel (%p227) target = $region20
        $region19: #{tpu_custom_call.1} parent=11 // pred_region
          _
        $region20: #{tpu_custom_call.1} parent=11 // pred_fallthru
          _
        // Predicated region
        $region21: #{tpu_custom_call.1} parent=11 // pred_check
          %p230 = pneg %p110
        $region22: #{tpu_custom_call.1} parent=11 // pred_check_branch
          %232 = sbr.rel (%p230) target = $region24
        $region23: #{tpu_custom_call.1} parent=11 // pred_region
          %s234 = ssub.s32 1024, 1024
          %235 = vsyncadd [#allocation7], %s234
          %s236 = sshll.u32 [#allocation8], 4
          %s237 = int_to_ptr.vmem [resolvable:$true] %s236
          %242 = dma.hbm_to_vmem [thread:$0]  %s3, 1024, %s237, [#allocation7], 64, 64, 4
        $region24: #{tpu_custom_call.1} parent=11 // pred_fallthru
          _
        // Predicated region
        $region25: #{tpu_custom_call.1} parent=11 // pred_check
          %p243 = pneg %p131
        $region26: #{tpu_custom_call.1} parent=11 // pred_check_branch
          %245 = sbr.rel (%p243) target = $region28
        $region27: #{tpu_custom_call.1} parent=11 // pred_region
          _
        $region28: #{tpu_custom_call.1} parent=11 // pred_fallthru
          _
        // Predicated region
        $region29: #{tpu_custom_call.1} parent=11 // pred_check
          %p246 = pneg %p152
        $region30: #{tpu_custom_call.1} parent=11 // pred_check_branch
          %248 = sbr.rel (%p246) target = $region32
        $region31: #{tpu_custom_call.1} parent=11 // pred_region
          %s250 = ssub.s32 1024, 1024
          %251 = vsyncadd [#allocation10], %s250
          %s252 = sshll.u32 [#allocation9], 4
          %s253 = int_to_ptr.vmem [resolvable:$true] %s252
          %258 = dma.hbm_to_vmem [thread:$0]  %s5, 1024, %s253, [#allocation10], 64, 64, 4
        $region32: #{tpu_custom_call.1} parent=11 // pred_fallthru
          _
        // Predicated region
        $region33: #{tpu_custom_call.1} parent=11 // pred_check
          %p259 = pneg %p173
        $region34: #{tpu_custom_call.1} parent=11 // pred_check_branch
          %261 = sbr.rel (%p259) target = $region36
        $region35: #{tpu_custom_call.1} parent=11 // pred_region
          _
        $region36: #{tpu_custom_call.1} parent=11 // pred_fallthru
          _
      $region12: #{tpu_custom_call.1} parent=5 // pred_fallthru
        _
      %p262 = scmp.lt.s32.totalorder %s21, 2
      // Predicated region
      $region37: #{tpu_custom_call.1} parent=5 // pred_check
        %p263 = pneg %p262
      $region38: #{tpu_custom_call.1} parent=5 // pred_check_branch
        %265 = sbr.rel (%p263) target = $region40
      $region39: #{tpu_custom_call.1} parent=5 // pred_region
        // Predicated region
        $region41: #{tpu_custom_call.1} parent=39 // pred_check
          %p266 = pneg %p41
        $region42: #{tpu_custom_call.1} parent=39 // pred_check_branch
          %268 = sbr.rel (%p266) target = $region44
        $region43: #{tpu_custom_call.1} parent=39 // pred_region
          %s269 = sand.u32 %s31, 1
          %s270 = scalar_lea.sflag [#allocation4], %s269
          %s271 = sand.u32 %s31, 1
          %s272 = smul.addr %s271, 16
          %s273 = scalar_lea.vmem [#allocation3], %s272
          %s274 = smul.u32 2, %s21
          %s276 = ssub.s32 256, 256
          %277 = vsyncadd %s270, %s276
          %s278 = smul.addr %s274, 128
          %s279 = scalar_lea.hbm %s0, %s278
          %s280 = sshll.u32 %s273, 4
          %s281 = int_to_ptr.vmem [resolvable:$true] %s280
          %286 = dma.hbm_to_vmem [thread:$0]  %s279, 256, %s281, %s270, 128, 128, 8
        $region44: #{tpu_custom_call.1} parent=39 // pred_fallthru
          _
      $region40: #{tpu_custom_call.1} parent=5 // pred_fallthru
        _
      %p287 = scmp.le.s32.totalorder 1, %s21
      %p288 = scmp.lt.s32.totalorder %s21, 3
      %p289 = pnand %p287, %p288
      %p290 = pneg %p289
      // Predicated region
      $region45: #{tpu_custom_call.1} parent=5 // pred_check
        _
      $region46: #{tpu_custom_call.1} parent=5 // pred_check_branch
        %292 = sbr.rel (%p289) target = $region48
      $region47: #{tpu_custom_call.1} parent=5 // pred_region
        %s293 = ssub.s32 %s21, 1
        %s294 = sand.u32 %s34, 1
        %s295 = scalar_lea.sflag [#allocation4], %s294
        %s296 = sand.u32 %s34, 1
        %s297 = smul.addr %s296, 16
        %s298 = scalar_lea.vmem [#allocation3], %s297
        // Predicated region
        $region49: #{tpu_custom_call.1} parent=47 // pred_check
          %p299 = pneg %p47
        $region50: #{tpu_custom_call.1} parent=47 // pred_check_branch
          %301 = sbr.rel (%p299) target = $region52
        $region51: #{tpu_custom_call.1} parent=47 // pred_region
          %302 = dma.done %s295, 256
        $region52: #{tpu_custom_call.1} parent=47 // pred_fallthru
          _
        // Predicated region
        $region53: #{tpu_custom_call.1} parent=47 // pred_check
          %p303 = pneg %p68
        $region54: #{tpu_custom_call.1} parent=47 // pred_check_branch
          %305 = sbr.rel (%p303) target = $region56
        $region55: #{tpu_custom_call.1} parent=47 // pred_region
          %306 = dma.done [#allocation7], 256
        $region56: #{tpu_custom_call.1} parent=47 // pred_fallthru
          _
        // Predicated region
        $region57: #{tpu_custom_call.1} parent=47 // pred_check
          %p307 = pneg %p110
        $region58: #{tpu_custom_call.1} parent=47 // pred_check_branch
          %309 = sbr.rel (%p307) target = $region60
        $region59: #{tpu_custom_call.1} parent=47 // pred_region
          %310 = dma.done [#allocation7], 1024
        $region60: #{tpu_custom_call.1} parent=47 // pred_fallthru
          _
        // Predicated region
        $region61: #{tpu_custom_call.1} parent=47 // pred_check
          %p311 = pneg %p152
        $region62: #{tpu_custom_call.1} parent=47 // pred_check_branch
          %313 = sbr.rel (%p311) target = $region64
        $region63: #{tpu_custom_call.1} parent=47 // pred_region
          %314 = dma.done [#allocation10], 1024
        $region64: #{tpu_custom_call.1} parent=47 // pred_fallthru
          _
        %s315 = sand.u32 %s34, 1
        %s316 = scalar_lea.sflag [#allocation4], %s315
        %s317 = sand.u32 %s34, 1
        %s318 = smul.addr %s317, 16
        %s319 = scalar_lea.vmem [#allocation3], %s318
        %p320 = pneg %p47
        %p321 = pneg %p44
        %p322 = pneg %p68
        %p323 = pneg %p65
        %p324 = pneg %p89
        %p325 = pneg %p86
        %p326 = pneg %p110
        %p327 = pneg %p107
        %p328 = pneg %p131
        %p329 = pneg %p128
        %p330 = pneg %p152
        %p331 = pneg %p149
        %p332 = pneg %p173
        %p333 = pneg %p170
        %p334 = pneg %p199
        %p335 = pneg %p196
        %s336 = sand.u32 %s186, 1
        %s337 = scalar_lea.sflag [#allocation5], %s336
        %s338 = sand.u32 %s186, 1
        %s339 = smul.addr %s338, 16
        %s340 = scalar_lea.vmem [#allocation11], %s339
        %s341 = smul.u32 2, %s26
        %s342 = smul.u32 2, %s26
        %v344 = vld [vmem:[%s298] sm:$0xff]
        %v345 = vld [vmem:[%s298 + $0x8] sm:$0xff]
        %v346 = vpack.c.bf16 %v345, %v344
        %v347 = vld [vmem:[#allocation6] sm:$0xf]
        %v348 = vld [vmem:[#allocation6 + $0x4] sm:$0xf]
        %v349 = vld [vmem:[#allocation6 + $0x8] sm:$0xf]
        %v350 = vld [vmem:[#allocation6 + $0xc] sm:$0xf]
        %v351 = vld [vmem:[%s2] sm:$0x1]
        %v353 = vlaneseq
        %v354 = vshrl.u32 %v353, 7
        %v355 = vsub.s32 0, %v354
        %v356 = vrot.slane %v351, %v355
        %v362 = vunpack.c.l.b16 %v347
        %v363 = vunpack.c.l.b16 %v348
        %v364 = vunpack.c.l.b16 %v349
        %v365 = vunpack.c.l.b16 %v350
        %v366 = vpack.c.b16 %v363, %v362
        %v367 = vpack.c.b16 %v365, %v364
        %vm370 = vcmask 261120
        %v372 = vsel %vm370, %v346, 0
        %374 = vmatprep.subr.bf16.mxu0 0
        %375 = vmatpush1.bf16.msra.mxu0 0
        %376 = vmatprep.subr.bf16.mxu0 0
        %377 = vmatpush1.bf16.msra.mxu0 0
        %378 = vmatprep.subr.bf16.mxu0 0
        %379 = vmatpush1.bf16.msra.mxu0 0
        %380 = vmatprep.subr.bf16.mxu0 0
        %381 = vmatpush1.bf16.msra.mxu0 0
        %382 = vmatprep.subr.bf16.mxu0 0
        %383 = vmatpush1.bf16.msra.mxu0 0
        %384 = vmatprep.subr.bf16.mxu0 0
        %385 = vmatpush1.bf16.msra.mxu0 0
        %386 = vmatprep.subr.bf16.mxu0 0
        %387 = vmatpush1.bf16.msra.mxu0 %v367
        %388 = vmatprep.subr.bf16.mxu0 0
        %389 = vmatpush1.bf16.msra.mxu0 %v366
        %390 = vmatprep.subr.bf16.mxu0 0
        %391 = vmatpush2.bf16.msra.mxu0 0
        %392 = vmatprep.subr.bf16.mxu0 0
        %393 = vmatpush2.bf16.msra.mxu0 0
        %394 = vmatprep.subr.bf16.mxu0 0
        %395 = vmatpush2.bf16.msra.mxu0 0
        %396 = vmatprep.subr.bf16.mxu0 0
        %397 = vmatpush2.bf16.msra.mxu0 0
        %398 = vmatprep.subr.bf16.mxu0 0
        %399 = vmatpush2.bf16.msra.mxu0 0
        %400 = vmatprep.subr.bf16.mxu0 0
        %401 = vmatpush2.bf16.msra.mxu0 0
        %402 = vmatprep.subr.bf16.mxu0 0
        %403 = vmatpush2.bf16.msra.mxu0 0
        %404 = vmatprep.subr.bf16.mxu0 0
        %405 = vmatpush2.bf16.msra.mxu0 0
        %406 = vmatprep.mubr.bf16.mxu0 0
        %407 = vmatmul.mubr.bf16.gmra.mxu0 %v372
        %v408 = vpop.f32.mrf.mxu0
        %v409 = vadd.f32 %v356, %v408
        %v410 = vpop.f32.mrf.mxu0
        %v411 = vpop.f32.mrf.mxu0
        %v412 = vadd.f32 %v356, %v411
        %v413 = vpop.f32.mrf.mxu0
        %414 = vdwg.mxu0
        %v415 = vmax.f32 %v409, 0.0
        %v416 = vmax.f32 %v412, 0.0
        %v417 = vpack.c.bf16 %v416, %v415
        %v419 = vunpack.c.l.b16 %v417
        %v420 = vunpack.c.h.b16 %v417
        %v421 = vpack.c.b16 %v419, %v419
        %v422 = vpack.c.b16 %v420, %v420
        %425 = vst [vmem:[#allocation2] sm:$0xf] %v421
        %426 = vst [vmem:[#allocation2 + $0x4] sm:$0xf] %v422
        %v427 = vld [vmem:[#allocation2] sm:$0xf]
        %v428 = vld [vmem:[#allocation2 + $0x4] sm:$0xf]
        %v429 = vld [vmem:[#allocation8] sm:$0xf]
        %v430 = vld [vmem:[#allocation8 + $0x4] sm:$0xf]
        %v431 = vld [vmem:[#allocation8 + $0x8] sm:$0xf]
        %v432 = vld [vmem:[#allocation8 + $0xc] sm:$0xf]
        %v433 = vld [vmem:[#allocation8 + $0x10] sm:$0xf]
        %v434 = vld [vmem:[#allocation8 + $0x14] sm:$0xf]
        %v435 = vld [vmem:[#allocation8 + $0x18] sm:$0xf]
        %v436 = vld [vmem:[#allocation8 + $0x1c] sm:$0xf]
        %v437 = vld [vmem:[#allocation8 + $0x20] sm:$0xf]
        %v438 = vld [vmem:[#allocation8 + $0x24] sm:$0xf]
        %v439 = vld [vmem:[#allocation8 + $0x28] sm:$0xf]
        %v440 = vld [vmem:[#allocation8 + $0x2c] sm:$0xf]
        %v441 = vld [vmem:[#allocation8 + $0x30] sm:$0xf]
        %v442 = vld [vmem:[#allocation8 + $0x34] sm:$0xf]
        %v443 = vld [vmem:[#allocation8 + $0x38] sm:$0xf]
        %v444 = vld [vmem:[#allocation8 + $0x3c] sm:$0xf]
        %v445 = vld [vmem:[%s4] sm:$0x1]
        %v447 = vlaneseq
        %v448 = vshrl.u32 %v447, 7
        %v449 = vsub.s32 0, %v448
        %v450 = vrot.slane %v445, %v449
        %v454 = vunpack.c.l.b16 %v427
        %v455 = vunpack.c.l.b16 %v428
        %v456 = vpack.c.b16 %v455, %v454
        %v474 = vunpack.c.l.b16 %v429
        %v475 = vunpack.c.l.b16 %v430
        %v476 = vunpack.c.l.b16 %v431
        %v477 = vunpack.c.l.b16 %v432
        %v478 = vunpack.c.l.b16 %v433
        %v479 = vunpack.c.l.b16 %v434
        %v480 = vunpack.c.l.b16 %v435
        %v481 = vunpack.c.l.b16 %v436
        %v482 = vunpack.c.l.b16 %v437
        %v483 = vunpack.c.l.b16 %v438
        %v484 = vunpack.c.l.b16 %v439
        %v485 = vunpack.c.l.b16 %v440
        %v486 = vunpack.c.l.b16 %v441
        %v487 = vunpack.c.l.b16 %v442
        %v488 = vunpack.c.l.b16 %v443
        %v489 = vunpack.c.l.b16 %v444
        %v490 = vpack.c.b16 %v475, %v474
        %v491 = vpack.c.b16 %v477, %v476
        %v492 = vpack.c.b16 %v479, %v478
        %v493 = vpack.c.b16 %v481, %v480
        %v494 = vpack.c.b16 %v483, %v482
        %v495 = vpack.c.b16 %v485, %v484
        %v496 = vpack.c.b16 %v487, %v486
        %v497 = vpack.c.b16 %v489, %v488
        %506 = vmatprep.subr.bf16.mxu0 0
        %507 = vmatpush1.bf16.msra.mxu0 %v497
        %508 = vmatprep.subr.bf16.mxu0 0
        %509 = vmatpush1.bf16.msra.mxu0 %v496
        %510 = vmatprep.subr.bf16.mxu0 0
        %511 = vmatpush1.bf16.msra.mxu0 %v495
        %512 = vmatprep.subr.bf16.mxu0 0
        %513 = vmatpush1.bf16.msra.mxu0 %v494
        %514 = vmatprep.subr.bf16.mxu0 0
        %515 = vmatpush1.bf16.msra.mxu0 %v493
        %516 = vmatprep.subr.bf16.mxu0 0
        %517 = vmatpush1.bf16.msra.mxu0 %v492
        %518 = vmatprep.subr.bf16.mxu0 0
        %519 = vmatpush1.bf16.msra.mxu0 %v491
        %520 = vmatprep.subr.bf16.mxu0 0
        %521 = vmatpush1.bf16.msra.mxu0 %v490
        %522 = vmatprep.subr.bf16.mxu0 0
        %523 = vmatpush2.bf16.msra.mxu0 0
        %524 = vmatprep.subr.bf16.mxu0 0
        %525 = vmatpush2.bf16.msra.mxu0 0
        %526 = vmatprep.subr.bf16.mxu0 0
        %527 = vmatpush2.bf16.msra.mxu0 0
        %528 = vmatprep.subr.bf16.mxu0 0
        %529 = vmatpush2.bf16.msra.mxu0 0
        %530 = vmatprep.subr.bf16.mxu0 0
        %531 = vmatpush2.bf16.msra.mxu0 0
        %532 = vmatprep.subr.bf16.mxu0 0
        %533 = vmatpush2.bf16.msra.mxu0 0
        %534 = vmatprep.subr.bf16.mxu0 0
        %535 = vmatpush2.bf16.msra.mxu0 0
        %536 = vmatprep.subr.bf16.mxu0 0
        %537 = vmatpush2.bf16.msra.mxu0 0
        %538 = vmatprep.mubr.bf16.mxu0 0
        %539 = vmatmul.mubr.bf16.gmra.mxu0 %v456
        %v540 = vpop.f32.mrf.mxu0
        %v541 = vadd.f32 %v450, %v540
        %v542 = vpop.f32.mrf.mxu0
        %v543 = vpop.f32.mrf.mxu0
        %v544 = vadd.f32 %v450, %v543
        %v545 = vpop.f32.mrf.mxu0
        %546 = vdwg.mxu0
        %v547 = vmax.f32 %v541, 0.0
        %v548 = vmax.f32 %v544, 0.0
        %v549 = vpack.c.bf16 %v548, %v547
        %v551 = vunpack.c.l.b16 %v549
        %v552 = vunpack.c.h.b16 %v549
        %v553 = vpack.c.b16 %v551, %v551
        %v554 = vpack.c.b16 %v552, %v552
        %557 = vst [vmem:[#allocation2] sm:$0xf] %v553
        %558 = vst [vmem:[#allocation2 + $0x4] sm:$0xf] %v554
        %v559 = vld [vmem:[#allocation2] sm:$0xf]
        %v560 = vld [vmem:[#allocation2 + $0x4] sm:$0xf]
        %v561 = vld [vmem:[#allocation9] sm:$0xf]
        %v562 = vld [vmem:[#allocation9 + $0x4] sm:$0xf]
        %v563 = vld [vmem:[#allocation9 + $0x8] sm:$0xf]
        %v564 = vld [vmem:[#allocation9 + $0xc] sm:$0xf]
        %v565 = vld [vmem:[#allocation9 + $0x10] sm:$0xf]
        %v566 = vld [vmem:[#allocation9 + $0x14] sm:$0xf]
        %v567 = vld [vmem:[#allocation9 + $0x18] sm:$0xf]
        %v568 = vld [vmem:[#allocation9 + $0x1c] sm:$0xf]
        %v569 = vld [vmem:[#allocation9 + $0x20] sm:$0xf]
        %v570 = vld [vmem:[#allocation9 + $0x24] sm:$0xf]
        %v571 = vld [vmem:[#allocation9 + $0x28] sm:$0xf]
        %v572 = vld [vmem:[#allocation9 + $0x2c] sm:$0xf]
        %v573 = vld [vmem:[#allocation9 + $0x30] sm:$0xf]
        %v574 = vld [vmem:[#allocation9 + $0x34] sm:$0xf]
        %v575 = vld [vmem:[#allocation9 + $0x38] sm:$0xf]
        %v576 = vld [vmem:[#allocation9 + $0x3c] sm:$0xf]
        %v577 = vld [vmem:[%s6] sm:$0x1]
        %v579 = vlaneseq
        %v580 = vshrl.u32 %v579, 7
        %v581 = vsub.s32 0, %v580
        %v582 = vrot.slane %v577, %v581
        %v586 = vunpack.c.l.b16 %v559
        %v587 = vunpack.c.l.b16 %v560
        %v588 = vpack.c.b16 %v587, %v586
        %v606 = vunpack.c.l.b16 %v561
        %v607 = vunpack.c.l.b16 %v562
        %v608 = vunpack.c.l.b16 %v563
        %v609 = vunpack.c.l.b16 %v564
        %v610 = vunpack.c.l.b16 %v565
        %v611 = vunpack.c.l.b16 %v566
        %v612 = vunpack.c.l.b16 %v567
        %v613 = vunpack.c.l.b16 %v568
        %v614 = vunpack.c.l.b16 %v569
        %v615 = vunpack.c.l.b16 %v570
        %v616 = vunpack.c.l.b16 %v571
        %v617 = vunpack.c.l.b16 %v572
        %v618 = vunpack.c.l.b16 %v573
        %v619 = vunpack.c.l.b16 %v574
        %v620 = vunpack.c.l.b16 %v575
        %v621 = vunpack.c.l.b16 %v576
        %v622 = vpack.c.b16 %v607, %v606
        %v623 = vpack.c.b16 %v609, %v608
        %v624 = vpack.c.b16 %v611, %v610
        %v625 = vpack.c.b16 %v613, %v612
        %v626 = vpack.c.b16 %v615, %v614
        %v627 = vpack.c.b16 %v617, %v616
        %v628 = vpack.c.b16 %v619, %v618
        %v629 = vpack.c.b16 %v621, %v620
        %638 = vmatprep.subr.bf16.mxu0 0
        %639 = vmatpush1.bf16.msra.mxu0 %v629
        %640 = vmatprep.subr.bf16.mxu0 0
        %641 = vmatpush1.bf16.msra.mxu0 %v628
        %642 = vmatprep.subr.bf16.mxu0 0
        %643 = vmatpush1.bf16.msra.mxu0 %v627
        %644 = vmatprep.subr.bf16.mxu0 0
        %645 = vmatpush1.bf16.msra.mxu0 %v626
        %646 = vmatprep.subr.bf16.mxu0 0
        %647 = vmatpush1.bf16.msra.mxu0 %v625
        %648 = vmatprep.subr.bf16.mxu0 0
        %649 = vmatpush1.bf16.msra.mxu0 %v624
        %650 = vmatprep.subr.bf16.mxu0 0
        %651 = vmatpush1.bf16.msra.mxu0 %v623
        %652 = vmatprep.subr.bf16.mxu0 0
        %653 = vmatpush1.bf16.msra.mxu0 %v622
        %654 = vmatprep.subr.bf16.mxu0 0
        %655 = vmatpush2.bf16.msra.mxu0 0
        %656 = vmatprep.subr.bf16.mxu0 0
        %657 = vmatpush2.bf16.msra.mxu0 0
        %658 = vmatprep.subr.bf16.mxu0 0
        %659 = vmatpush2.bf16.msra.mxu0 0
        %660 = vmatprep.subr.bf16.mxu0 0
        %661 = vmatpush2.bf16.msra.mxu0 0
        %662 = vmatprep.subr.bf16.mxu0 0
        %663 = vmatpush2.bf16.msra.mxu0 0
        %664 = vmatprep.subr.bf16.mxu0 0
        %665 = vmatpush2.bf16.msra.mxu0 0
        %666 = vmatprep.subr.bf16.mxu0 0
        %667 = vmatpush2.bf16.msra.mxu0 0
        %668 = vmatprep.subr.bf16.mxu0 0
        %669 = vmatpush2.bf16.msra.mxu0 0
        %670 = vmatprep.mubr.bf16.mxu0 0
        %671 = vmatmul.mubr.bf16.gmra.mxu0 %v588
        %v672 = vpop.f32.mrf.mxu0
        %v673 = vadd.f32 %v582, %v672
        %v674 = vpop.f32.mrf.mxu0
        %v675 = vpop.f32.mrf.mxu0
        %v676 = vadd.f32 %v582, %v675
        %v677 = vpop.f32.mrf.mxu0
        %678 = vdwg.mxu0
        %679 = vst [vmem:[%s340] sm:$0xff] %v673
        %680 = vst [vmem:[%s340 + $0x8] sm:$0xff] %v676
        %s681 = sand.u32 %s186, 1
        %s682 = scalar_lea.sflag [#allocation5], %s681
        %s683 = sand.u32 %s186, 1
        %s684 = smul.addr %s683, 16
        %s685 = scalar_lea.vmem [#allocation11], %s684
        // Predicated region
        $region65: #{tpu_custom_call.1} parent=47 // pred_check
          %p686 = pneg %p196
        $region66: #{tpu_custom_call.1} parent=47 // pred_check_branch
          %688 = sbr.rel (%p686) target = $region68
        $region67: #{tpu_custom_call.1} parent=47 // pred_region
          %s689 = smul.u32 2, %s26
          %s691 = ssub.s32 256, 256
          %692 = vsyncadd %s682, %s691
          %s693 = smul.addr %s689, 128
          %s694 = scalar_lea.hbm %s7, %s693
          %s695 = sshll.u32 %s685, 4
          %s696 = int_to_ptr.vmem [resolvable:$true] %s695
          %701 = dma.vmem_to_hbm [thread:$0]  %s696, 256, %s694, %s682, 128, 128, 8
        $region68: #{tpu_custom_call.1} parent=47 // pred_fallthru
          _
      $region48: #{tpu_custom_call.1} parent=5 // pred_fallthru
        _
      %p702 = scmp.le.s32.totalorder 2, %s21
      // Predicated region
      $region69: #{tpu_custom_call.1} parent=5 // pred_check
        %p703 = pneg %p702
      $region70: #{tpu_custom_call.1} parent=5 // pred_check_branch
        %705 = sbr.rel (%p703) target = $region72
      $region71: #{tpu_custom_call.1} parent=5 // pred_region
        %s706 = ssub.s32 %s21, 2
        // Predicated region
        $region73: #{tpu_custom_call.1} parent=71 // pred_check
          %p707 = pneg %p202
        $region74: #{tpu_custom_call.1} parent=71 // pred_check_branch
          %709 = sbr.rel (%p707) target = $region76
        $region75: #{tpu_custom_call.1} parent=71 // pred_region
          %s710 = sand.u32 %s187, 1
          %s711 = scalar_lea.sflag [#allocation5], %s710
          %s712 = sand.u32 %s187, 1
          %s713 = smul.addr %s712, 16
          %s714 = scalar_lea.vmem [#allocation11], %s713
          %715 = dma.done %s711, 256
        $region76: #{tpu_custom_call.1} parent=71 // pred_fallthru
          _
      $region72: #{tpu_custom_call.1} parent=5 // pred_fallthru
        _
    $region6: #{tpu_custom_call.1} parent=1 // loop_footer
      %s25 = sadd.s32 1, %s21
    $region7: #{tpu_custom_call.1} parent=1 // loop_footer_branch
      %20 = sbr.rel target = $region3
    $region8: #{tpu_custom_call.1} parent=1 // loop_exit
      _
    %716 = vsyncpa [#allocation4], 1
    %s717 = scalar_lea.sflag [#allocation4], 1
    %718 = vsyncpa %s717, 1
    %719 = vsyncpa [#allocation7], 1
    %720 = vsyncpa [#allocation10], 1
    %721 = vsyncpa [#allocation5], 1
    %s722 = scalar_lea.sflag [#allocation5], 1
    %723 = vsyncpa %s722, 1

// kernel: tpu_custom_call.1
$region0: #{tpu_custom_call.1}
  #allocation0 [shape = 'u32[]', space=smem, size = 0x4, offset = 0x4, fixed_abs, tag = 'smem constant byte address 0x4 - core index']
  #allocation1 [shape = 'u32[144,128]{1,0:T(1,128)}', space=vmem, size = 0x12000, scoped, tag = 'internal scratch']
  #allocation2 [shape = 'bf16[16,128]{1,0:T(8,128)(2,1)}', space=vmem, size = 0x1000, scoped, tag = 'scratch operand']
  %s0 = inlined_call_operand.hbm [shape: f32[32,32], index: 0, kind: input, shape index: {}]
  %s1 = inlined_call_operand.hbm [shape: bf16[32,128], index: 1, kind: input, shape index: {}]
  %s2 = inlined_call_operand.vmem [shape: f32[1,128], index: 2, kind: input, shape index: {}]
  %s3 = inlined_call_operand.hbm [shape: bf16[128,128], index: 3, kind: input, shape index: {}]
  %s4 = inlined_call_operand.vmem [shape: f32[1,128], index: 4, kind: input, shape index: {}]
  %s5 = inlined_call_operand.hbm [shape: bf16[128,128], index: 5, kind: input, shape index: {}]
  %s6 = inlined_call_operand.vmem [shape: f32[1,128], index: 6, kind: input, shape index: {}]
  %s7 = inlined_call_operand.hbm [shape: f32[32,128], index: 7, kind: output, shape index: {}]
  %s8 = sld [smem:[#allocation0]]
  $region77: #{tpu_custom_call.1} parent=0
    _
  %s10 = ssub.s32 1, %s8
  %s11 = scalar_select 0, %s10, %s8
  $region1: #{tpu_custom_call.1} parent=0
    #allocation3 [shape = 'u8[16384]{0}', space=vmem, size = 0x4000, scoped, tag = 'input window, operand 0']
    #allocation4 [shape = 's32[2]{0}', space=sflag, size = 0x8, scoped, tag = 'scoped memory for tpu_custom_call.1']
    #allocation5 [shape = 's32[2]{0}', space=sflag, size = 0x8, scoped, tag = 'scoped memory for tpu_custom_call.1']
    #allocation6 [shape = 'u8[8192]{0}', space=vmem, size = 0x2000, scoped, tag = 'input window, operand 1, single buffered']
    #allocation7 [shape = 's32[1]{0}', space=sflag, size = 0x4, scoped, tag = 'scoped memory for tpu_custom_call.1']
    #allocation8 [shape = 'u8[32768]{0}', space=vmem, size = 0x8000, scoped, tag = 'input window, operand 3, single buffered']
    #allocation9 [shape = 'u8[32768]{0}', space=vmem, size = 0x8000, scoped, tag = 'input window, operand 5, single buffered']
    #allocation10 [shape = 's32[1]{0}', space=sflag, size = 0x4, scoped, tag = 'scoped memory for tpu_custom_call.1']
    #allocation11 [shape = 'u8[16384]{0}', space=vmem, size = 0x4000, scoped, tag = 'output window, operand 0']
    %12 = vsyncpa [#allocation4], 0
    %s13 = scalar_lea.sflag [#allocation4], 1
    %14 = vsyncpa %s13, 0
    %15 = vsyncpa [#allocation7], 0
    %16 = vsyncpa [#allocation10], 0
    %17 = vsyncpa [#allocation5], 0
    %s18 = scalar_lea.sflag [#allocation5], 1
    %19 = vsyncpa %s18, 0
    loop: start=0, step=1, limit=4
    $region2: #{tpu_custom_call.1} parent=1 // loop_pre_header
      _
    $region3: #{tpu_custom_call.1} parent=1 // loop_header
      %s21 = sphi 0, %s25
      %p22 = scmp.ge.s32.totalorder %s21, 4
      %s31 = sphi 0, %s33
      %s34 = sphi 0, %s31
      %s35 = sphi 0, %s34
      %s51 = sphi 0, %s35
      %s55 = sphi 0, %s55
      %s57 = sphi 0, %s55
      %s58 = sphi 0, %s57
      %s72 = sphi 0, %s58
      %s76 = sphi 0, %s76
      %s78 = sphi 0, %s76
      %s79 = sphi 0, %s78
      %s93 = sphi 0, %s79
      %s97 = sphi 0, %s97
      %s99 = sphi 0, %s97
      %s100 = sphi 0, %s99
      %s114 = sphi 0, %s100
      %s118 = sphi 0, %s118
      %s120 = sphi 0, %s118
      %s121 = sphi 0, %s120
      %s135 = sphi 0, %s121
      %s139 = sphi 0, %s139
      %s141 = sphi 0, %s139
      %s142 = sphi 0, %s141
      %s156 = sphi 0, %s142
      %s160 = sphi 0, %s160
      %s162 = sphi 0, %s160
      %s163 = sphi 0, %s162
      %s177 = sphi 0, %s163
      %s183 = sphi 0, %s185
      %s186 = sphi 0, %s183
      %s187 = sphi 0, %s186
      %s203 = sphi 0, %s187
    $region4: #{tpu_custom_call.1} parent=1 // loop_header_branch
      %24 = sbr.rel (%p22) target = $region8
    $region5: #{tpu_custom_call.1} parent=1 // loop_body
      %s26 = ssub.s32 %s21, 1
      %s27 = ssub.s32 %s21, 2
      %s28 = sadd.s32 %s21, 1
      %s29 = ssub.s32 %s21, %s28
      %p30 = scmp.eq.s32.totalorder %s29, 0
      %s32 = sadd.s32 %s31, 1
      %s33 = scalar_select %p30, %s31, %s32
      %p36 = pneg %p30
      %p37 = scmp.eq.s32.totalorder %s21, 1
      %p38 = por %p36, %p37
      %p39 = scmp.ne.s32.totalorder %s31, %s34
      %p40 = scmp.eq.s32.totalorder %s21, 0
      %p41 = por %p39, %p40
      %p42 = scmp.ne.s32.totalorder %s31, %s34
      %p43 = scmp.eq.s32.totalorder %s26, 1
      %p44 = por %p42, %p43
      %p45 = scmp.ne.s32.totalorder %s34, %s35
      %p46 = scmp.eq.s32.totalorder %s26, 0
      %p47 = por %p45, %p46
      %p48 = scmp.ne.s32.totalorder %s34, %s35
      %p49 = scmp.eq.s32.totalorder %s27, 1
      %p50 = por %p48, %p49
      %p52 = scmp.ne.s32.totalorder %s35, %s51
      %p53 = scmp.eq.s32.totalorder %s27, 0
      %p54 = por %p52, %p53
      %s56 = sadd.s32 %s55, 1
      %p59 = scmp.eq.s32.totalorder %s21, 1
      %p60 = scmp.ne.s32.totalorder %s55, %s57
      %p61 = scmp.eq.s32.totalorder %s21, 0
      %p62 = por %p60, %p61
      %p63 = scmp.ne.s32.totalorder %s55, %s57
      %p64 = scmp.eq.s32.totalorder %s26, 1
      %p65 = por %p63, %p64
      %p66 = scmp.ne.s32.totalorder %s57, %s58
      %p67 = scmp.eq.s32.totalorder %s26, 0
      %p68 = por %p66, %p67
      %p69 = scmp.ne.s32.totalorder %s57, %s58
      %p70 = scmp.eq.s32.totalorder %s27, 1
      %p71 = por %p69, %p70
      %p73 = scmp.ne.s32.totalorder %s58, %s72
      %p74 = scmp.eq.s32.totalorder %s27, 0
      %p75 = por %p73, %p74
      %s77 = sadd.s32 %s76, 1
      %p80 = scmp.eq.s32.totalorder %s21, 1
      %p81 = scmp.ne.s32.totalorder %s76, %s78
      %p82 = scmp.eq.s32.totalorder %s21, 0
      %p83 = por %p81, %p82
      %p84 = scmp.ne.s32.totalorder %s76, %s78
      %p85 = scmp.eq.s32.totalorder %s26, 1
      %p86 = por %p84, %p85
      %p87 = scmp.ne.s32.totalorder %s78, %s79
      %p88 = scmp.eq.s32.totalorder %s26, 0
      %p89 = por %p87, %p88
      %p90 = scmp.ne.s32.totalorder %s78, %s79
      %p91 = scmp.eq.s32.totalorder %s27, 1
      %p92 = por %p90, %p91
      %p94 = scmp.ne.s32.totalorder %s79, %s93
      %p95 = scmp.eq.s32.totalorder %s27, 0
      %p96 = por %p94, %p95
      %s98 = sadd.s32 %s97, 1
      %p101 = scmp.eq.s32.totalorder %s21, 1
      %p102 = scmp.ne.s32.totalorder %s97, %s99
      %p103 = scmp.eq.s32.totalorder %s21, 0
      %p104 = por %p102, %p103
      %p105 = scmp.ne.s32.totalorder %s97, %s99
      %p106 = scmp.eq.s32.totalorder %s26, 1
      %p107 = por %p105, %p106
      %p108 = scmp.ne.s32.totalorder %s99, %s100
      %p109 = scmp.eq.s32.totalorder %s26, 0
      %p110 = por %p108, %p109
      %p111 = scmp.ne.s32.totalorder %s99, %s100
      %p112 = scmp.eq.s32.totalorder %s27, 1
      %p113 = por %p111, %p112
      %p115 = scmp.ne.s32.totalorder %s100, %s114
      %p116 = scmp.eq.s32.totalorder %s27, 0
      %p117 = por %p115, %p116
      %s119 = sadd.s32 %s118, 1
      %p122 = scmp.eq.s32.totalorder %s21, 1
      %p123 = scmp.ne.s32.totalorder %s118, %s120
      %p124 = scmp.eq.s32.totalorder %s21, 0
      %p125 = por %p123, %p124
      %p126 = scmp.ne.s32.totalorder %s118, %s120
      %p127 = scmp.eq.s32.totalorder %s26, 1
      %p128 = por %p126, %p127
      %p129 = scmp.ne.s32.totalorder %s120, %s121
      %p130 = scmp.eq.s32.totalorder %s26, 0
      %p131 = por %p129, %p130
      %p132 = scmp.ne.s32.totalorder %s120, %s121
      %p133 = scmp.eq.s32.totalorder %s27, 1
      %p134 = por %p132, %p133
      %p136 = scmp.ne.s32.totalorder %s121, %s135
      %p137 = scmp.eq.s32.totalorder %s27, 0
      %p138 = por %p136, %p137
      %s140 = sadd.s32 %s139, 1
      %p143 = scmp.eq.s32.totalorder %s21, 1
      %p144 = scmp.ne.s32.totalorder %s139, %s141
      %p145 = scmp.eq.s32.totalorder %s21, 0
      %p146 = por %p144, %p145
      %p147 = scmp.ne.s32.totalorder %s139, %s141
      %p148 = scmp.eq.s32.totalorder %s26, 1
      %p149 = por %p147, %p148
      %p150 = scmp.ne.s32.totalorder %s141, %s142
      %p151 = scmp.eq.s32.totalorder %s26, 0
      %p152 = por %p150, %p151
      %p153 = scmp.ne.s32.totalorder %s141, %s142
      %p154 = scmp.eq.s32.totalorder %s27, 1
      %p155 = por %p153, %p154
      %p157 = scmp.ne.s32.totalorder %s142, %s156
      %p158 = scmp.eq.s32.totalorder %s27, 0
      %p159 = por %p157, %p158
      %s161 = sadd.s32 %s160, 1
      %p164 = scmp.eq.s32.totalorder %s21, 1
      %p165 = scmp.ne.s32.totalorder %s160, %s162
      %p166 = scmp.eq.s32.totalorder %s21, 0
      %p167 = por %p165, %p166
      %p168 = scmp.ne.s32.totalorder %s160, %s162
      %p169 = scmp.eq.s32.totalorder %s26, 1
      %p170 = por %p168, %p169
      %p171 = scmp.ne.s32.totalorder %s162, %s163
      %p172 = scmp.eq.s32.totalorder %s26, 0
      %p173 = por %p171, %p172
      %p174 = scmp.ne.s32.totalorder %s162, %s163
      %p175 = scmp.eq.s32.totalorder %s27, 1
      %p176 = por %p174, %p175
      %p178 = scmp.ne.s32.totalorder %s163, %s177
      %p179 = scmp.eq.s32.totalorder %s27, 0
      %p180 = por %p178, %p179
      %s181 = ssub.s32 %s21, %s28
      %p182 = scmp.eq.s32.totalorder %s181, 0
      %s184 = sadd.s32 %s183, 1
      %s185 = scalar_select %p182, %s183, %s184
      %p188 = pneg %p182
      %p189 = scmp.eq.s32.totalorder %s21, 1
      %p190 = por %p188, %p189
      %p191 = scmp.ne.s32.totalorder %s183, %s186
      %p192 = scmp.eq.s32.totalorder %s21, 0
      %p193 = por %p191, %p192
      %p194 = scmp.ne.s32.totalorder %s183, %s186
      %p195 = scmp.eq.s32.totalorder %s26, 1
      %p196 = por %p194, %p195
      %p197 = scmp.ne.s32.totalorder %s186, %s187
      %p198 = scmp.eq.s32.totalorder %s26, 0
      %p199 = por %p197, %p198
      %p200 = scmp.ne.s32.totalorder %s186, %s187
      %p201 = scmp.eq.s32.totalorder %s27, 1
      %p202 = por %p200, %p201
      %p204 = scmp.ne.s32.totalorder %s187, %s203
      %p205 = scmp.eq.s32.totalorder %s27, 0
      %p206 = por %p204, %p205
      %p207 = scmp.le.s32.totalorder 1, %s21
      %p208 = scmp.lt.s32.totalorder %s21, 3
      %p209 = pnand %p207, %p208
      %p210 = pneg %p209
      // Predicated region
      $region9: #{tpu_custom_call.1} parent=5 // pred_check
        _
      $region10: #{tpu_custom_call.1} parent=5 // pred_check_branch
        %212 = sbr.rel (%p209) target = $region12
      $region11: #{tpu_custom_call.1} parent=5 // pred_region
        %s213 = ssub.s32 %s21, 1
        // Predicated region
        $region13: #{tpu_custom_call.1} parent=11 // pred_check
          %p214 = pneg %p68
        $region14: #{tpu_custom_call.1} parent=11 // pred_check_branch
          %216 = sbr.rel (%p214) target = $region16
        $region15: #{tpu_custom_call.1} parent=11 // pred_region
          %s218 = ssub.s32 256, 256
          %219 = vsyncadd [#allocation7], %s218
          %s220 = sshll.u32 [#allocation6], 4
          %s221 = int_to_ptr.vmem [resolvable:$true] %s220
          %226 = dma.hbm_to_vmem [thread:$0]  %s1, 256, %s221, [#allocation7], 64, 64, 4
        $region16: #{tpu_custom_call.1} parent=11 // pred_fallthru
          _
        // Predicated region
        $region17: #{tpu_custom_call.1} parent=11 // pred_check
          %p227 = pneg %p89
        $region18: #{tpu_custom_call.1} parent=11 // pred_check_branch
          %229 = sbr.rel (%p227) target = $region20
        $region19: #{tpu_custom_call.1} parent=11 // pred_region
          _
        $region20: #{tpu_custom_call.1} parent=11 // pred_fallthru
          _
        // Predicated region
        $region21: #{tpu_custom_call.1} parent=11 // pred_check
          %p230 = pneg %p110
        $region22: #{tpu_custom_call.1} parent=11 // pred_check_branch
          %232 = sbr.rel (%p230) target = $region24
        $region23: #{tpu_custom_call.1} parent=11 // pred_region
          %s234 = ssub.s32 1024, 1024
          %235 = vsyncadd [#allocation7], %s234
          %s236 = sshll.u32 [#allocation8], 4
          %s237 = int_to_ptr.vmem [resolvable:$true] %s236
          %242 = dma.hbm_to_vmem [thread:$0]  %s3, 1024, %s237, [#allocation7], 64, 64, 4
        $region24: #{tpu_custom_call.1} parent=11 // pred_fallthru
          _
        // Predicated region
        $region25: #{tpu_custom_call.1} parent=11 // pred_check
          %p243 = pneg %p131
        $region26: #{tpu_custom_call.1} parent=11 // pred_check_branch
          %245 = sbr.rel (%p243) target = $region28
        $region27: #{tpu_custom_call.1} parent=11 // pred_region
          _
        $region28: #{tpu_custom_call.1} parent=11 // pred_fallthru
          _
        // Predicated region
        $region29: #{tpu_custom_call.1} parent=11 // pred_check
          %p246 = pneg %p152
        $region30: #{tpu_custom_call.1} parent=11 // pred_check_branch
          %248 = sbr.rel (%p246) target = $region32
        $region31: #{tpu_custom_call.1} parent=11 // pred_region
          %s250 = ssub.s32 1024, 1024
          %251 = vsyncadd [#allocation10], %s250
          %s252 = sshll.u32 [#allocation9], 4
          %s253 = int_to_ptr.vmem [resolvable:$true] %s252
          %258 = dma.hbm_to_vmem [thread:$0]  %s5, 1024, %s253, [#allocation10], 64, 64, 4
        $region32: #{tpu_custom_call.1} parent=11 // pred_fallthru
          _
        // Predicated region
        $region33: #{tpu_custom_call.1} parent=11 // pred_check
          %p259 = pneg %p173
        $region34: #{tpu_custom_call.1} parent=11 // pred_check_branch
          %261 = sbr.rel (%p259) target = $region36
        $region35: #{tpu_custom_call.1} parent=11 // pred_region
          _
        $region36: #{tpu_custom_call.1} parent=11 // pred_fallthru
          _
      $region12: #{tpu_custom_call.1} parent=5 // pred_fallthru
        _
      %p262 = scmp.lt.s32.totalorder %s21, 2
      // Predicated region
      $region37: #{tpu_custom_call.1} parent=5 // pred_check
        %p263 = pneg %p262
      $region38: #{tpu_custom_call.1} parent=5 // pred_check_branch
        %265 = sbr.rel (%p263) target = $region40
      $region39: #{tpu_custom_call.1} parent=5 // pred_region
        // Predicated region
        $region41: #{tpu_custom_call.1} parent=39 // pred_check
          %p266 = pneg %p41
        $region42: #{tpu_custom_call.1} parent=39 // pred_check_branch
          %268 = sbr.rel (%p266) target = $region44
        $region43: #{tpu_custom_call.1} parent=39 // pred_region
          %s269 = sand.u32 %s31, 1
          %s270 = scalar_lea.sflag [#allocation4], %s269
          %s271 = sand.u32 %s31, 1
          %s272 = smul.addr %s271, 16
          %s273 = scalar_lea.vmem [#allocation3], %s272
          %s274 = smul.u32 2, %s21
          %s276 = ssub.s32 256, 256
          %277 = vsyncadd %s270, %s276
          %s278 = smul.addr %s274, 128
          %s279 = scalar_lea.hbm %s0, %s278
          %s280 = sshll.u32 %s273, 4
          %s281 = int_to_ptr.vmem [resolvable:$true] %s280
          %286 = dma.hbm_to_vmem [thread:$0]  %s279, 256, %s281, %s270, 128, 128, 8
        $region44: #{tpu_custom_call.1} parent=39 // pred_fallthru
          _
      $region40: #{tpu_custom_call.1} parent=5 // pred_fallthru
        _
      %p287 = scmp.le.s32.totalorder 1, %s21
      %p288 = scmp.lt.s32.totalorder %s21, 3
      %p289 = pnand %p287, %p288
      %p290 = pneg %p289
      // Predicated region
      $region45: #{tpu_custom_call.1} parent=5 // pred_check
        _
      $region46: #{tpu_custom_call.1} parent=5 // pred_check_branch
        %292 = sbr.rel (%p289) target = $region48
      $region47: #{tpu_custom_call.1} parent=5 // pred_region
        %s293 = ssub.s32 %s21, 1
        %s294 = sand.u32 %s34, 1
        %s295 = scalar_lea.sflag [#allocation4], %s294
        %s296 = sand.u32 %s34, 1
        %s297 = smul.addr %s296, 16
        %s298 = scalar_lea.vmem [#allocation3], %s297
        // Predicated region
        $region49: #{tpu_custom_call.1} parent=47 // pred_check
          %p299 = pneg %p47
        $region50: #{tpu_custom_call.1} parent=47 // pred_check_branch
          %301 = sbr.rel (%p299) target = $region52
        $region51: #{tpu_custom_call.1} parent=47 // pred_region
          %302 = dma.done %s295, 256
        $region52: #{tpu_custom_call.1} parent=47 // pred_fallthru
          _
        // Predicated region
        $region53: #{tpu_custom_call.1} parent=47 // pred_check
          %p303 = pneg %p68
        $region54: #{tpu_custom_call.1} parent=47 // pred_check_branch
          %305 = sbr.rel (%p303) target = $region56
        $region55: #{tpu_custom_call.1} parent=47 // pred_region
          %306 = dma.done [#allocation7], 256
        $region56: #{tpu_custom_call.1} parent=47 // pred_fallthru
          _
        // Predicated region
        $region57: #{tpu_custom_call.1} parent=47 // pred_check
          %p307 = pneg %p110
        $region58: #{tpu_custom_call.1} parent=47 // pred_check_branch
          %309 = sbr.rel (%p307) target = $region60
        $region59: #{tpu_custom_call.1} parent=47 // pred_region
          %310 = dma.done [#allocation7], 1024
        $region60: #{tpu_custom_call.1} parent=47 // pred_fallthru
          _
        // Predicated region
        $region61: #{tpu_custom_call.1} parent=47 // pred_check
          %p311 = pneg %p152
        $region62: #{tpu_custom_call.1} parent=47 // pred_check_branch
          %313 = sbr.rel (%p311) target = $region64
        $region63: #{tpu_custom_call.1} parent=47 // pred_region
          %314 = dma.done [#allocation10], 1024
        $region64: #{tpu_custom_call.1} parent=47 // pred_fallthru
          _
        %s315 = sand.u32 %s34, 1
        %s316 = scalar_lea.sflag [#allocation4], %s315
        %s317 = sand.u32 %s34, 1
        %s318 = smul.addr %s317, 16
        %s319 = scalar_lea.vmem [#allocation3], %s318
        %p320 = pneg %p47
        %p321 = pneg %p44
        %p322 = pneg %p68
        %p323 = pneg %p65
        %p324 = pneg %p89
        %p325 = pneg %p86
        %p326 = pneg %p110
        %p327 = pneg %p107
        %p328 = pneg %p131
        %p329 = pneg %p128
        %p330 = pneg %p152
        %p331 = pneg %p149
        %p332 = pneg %p173
        %p333 = pneg %p170
        %p334 = pneg %p199
        %p335 = pneg %p196
        %s336 = sand.u32 %s186, 1
        %s337 = scalar_lea.sflag [#allocation5], %s336
        %s338 = sand.u32 %s186, 1
        %s339 = smul.addr %s338, 16
        %s340 = scalar_lea.vmem [#allocation11], %s339
        %s341 = smul.u32 2, %s26
        %s342 = smul.u32 2, %s26
        %v344 = vld [vmem:[%s298] sm:$0xff]
        %v345 = vld [vmem:[%s298 + $0x8] sm:$0xff]
        %v346 = vpack.c.bf16 %v345, %v344
        %v347 = vld [vmem:[#allocation6] sm:$0xf]
        %v348 = vld [vmem:[#allocation6 + $0x4] sm:$0xf]
        %v349 = vld [vmem:[#allocation6 + $0x8] sm:$0xf]
        %v350 = vld [vmem:[#allocation6 + $0xc] sm:$0xf]
        %v351 = vld [vmem:[%s2] sm:$0x1]
        %v353 = vlaneseq
        %v354 = vshrl.u32 %v353, 7
        %v355 = vsub.s32 0, %v354
        %v356 = vrot.slane %v351, %v355
        %v362 = vunpack.c.l.b16 %v347
        %v363 = vunpack.c.l.b16 %v348
        %v364 = vunpack.c.l.b16 %v349
        %v365 = vunpack.c.l.b16 %v350
        %v366 = vpack.c.b16 %v363, %v362
        %v367 = vpack.c.b16 %v365, %v364
        %vm370 = vcmask 261120
        %v372 = vsel %vm370, %v346, 0
        %374 = vmatprep.subr.bf16.mxu0 0
        %375 = vmatpush1.bf16.msra.mxu0 0
        %376 = vmatprep.subr.bf16.mxu0 0
        %377 = vmatpush1.bf16.msra.mxu0 0
        %378 = vmatprep.subr.bf16.mxu0 0
        %379 = vmatpush1.bf16.msra.mxu0 0
        %380 = vmatprep.subr.bf16.mxu0 0
        %381 = vmatpush1.bf16.msra.mxu0 0
        %382 = vmatprep.subr.bf16.mxu0 0
        %383 = vmatpush1.bf16.msra.mxu0 0
        %384 = vmatprep.subr.bf16.mxu0 0
        %385 = vmatpush1.bf16.msra.mxu0 0
        %386 = vmatprep.subr.bf16.mxu0 0
        %387 = vmatpush1.bf16.msra.mxu0 %v367
        %388 = vmatprep.subr.bf16.mxu0 0
        %389 = vmatpush1.bf16.msra.mxu0 %v366
        %390 = vmatprep.subr.bf16.mxu0 0
        %391 = vmatpush2.bf16.msra.mxu0 0
        %392 = vmatprep.subr.bf16.mxu0 0
        %393 = vmatpush2.bf16.msra.mxu0 0
        %394 = vmatprep.subr.bf16.mxu0 0
        %395 = vmatpush2.bf16.msra.mxu0 0
        %396 = vmatprep.subr.bf16.mxu0 0
        %397 = vmatpush2.bf16.msra.mxu0 0
        %398 = vmatprep.subr.bf16.mxu0 0
        %399 = vmatpush2.bf16.msra.mxu0 0
        %400 = vmatprep.subr.bf16.mxu0 0
        %401 = vmatpush2.bf16.msra.mxu0 0
        %402 = vmatprep.subr.bf16.mxu0 0
        %403 = vmatpush2.bf16.msra.mxu0 0
        %404 = vmatprep.subr.bf16.mxu0 0
        %405 = vmatpush2.bf16.msra.mxu0 0
        %406 = vmatprep.mubr.bf16.mxu0 0
        %407 = vmatmul.mubr.bf16.gmra.mxu0 %v372
        %v408 = vpop.f32.mrf.mxu0
        %v409 = vadd.f32 %v356, %v408
        %v410 = vpop.f32.mrf.mxu0
        %v411 = vpop.f32.mrf.mxu0
        %v412 = vadd.f32 %v356, %v411
        %v413 = vpop.f32.mrf.mxu0
        %414 = vdwg.mxu0
        %v415 = vmax.f32 %v409, 0.0
        %v416 = vmax.f32 %v412, 0.0
        %v417 = vpack.c.bf16 %v416, %v415
        %v419 = vunpack.c.l.b16 %v417
        %v420 = vunpack.c.h.b16 %v417
        %v421 = vpack.c.b16 %v419, %v419
        %v422 = vpack.c.b16 %v420, %v420
        %425 = vst [vmem:[#allocation2] sm:$0xf] %v421
        %426 = vst [vmem:[#allocation2 + $0x4] sm:$0xf] %v422
        %v427 = vld [vmem:[#allocation2] sm:$0xf]
        %v428 = vld [vmem:[#allocation2 + $0x4] sm:$0xf]
        %v429 = vld [vmem:[#allocation8] sm:$0xf]
        %v430 = vld [vmem:[#allocation8 + $0x4] sm:$0xf]
        %v431 = vld [vmem:[#allocation8 + $0x8] sm:$0xf]
        %v432 = vld [vmem:[#allocation8 + $0xc] sm:$0xf]
        %v433 = vld [vmem:[#allocation8 + $0x10] sm:$0xf]
        %v434 = vld [vmem:[#allocation8 + $0x14] sm:$0xf]
        %v435 = vld [vmem:[#allocation8 + $0x18] sm:$0xf]
        %v436 = vld [vmem:[#allocation8 + $0x1c] sm:$0xf]
        %v437 = vld [vmem:[#allocation8 + $0x20] sm:$0xf]
        %v438 = vld [vmem:[#allocation8 + $0x24] sm:$0xf]
        %v439 = vld [vmem:[#allocation8 + $0x28] sm:$0xf]
        %v440 = vld [vmem:[#allocation8 + $0x2c] sm:$0xf]
        %v441 = vld [vmem:[#allocation8 + $0x30] sm:$0xf]
        %v442 = vld [vmem:[#allocation8 + $0x34] sm:$0xf]
        %v443 = vld [vmem:[#allocation8 + $0x38] sm:$0xf]
        %v444 = vld [vmem:[#allocation8 + $0x3c] sm:$0xf]
        %v445 = vld [vmem:[%s4] sm:$0x1]
        %v447 = vlaneseq
        %v448 = vshrl.u32 %v447, 7
        %v449 = vsub.s32 0, %v448
        %v450 = vrot.slane %v445, %v449
        %v454 = vunpack.c.l.b16 %v427
        %v455 = vunpack.c.l.b16 %v428
        %v456 = vpack.c.b16 %v455, %v454
        %v474 = vunpack.c.l.b16 %v429
        %v475 = vunpack.c.l.b16 %v430
        %v476 = vunpack.c.l.b16 %v431
        %v477 = vunpack.c.l.b16 %v432
        %v478 = vunpack.c.l.b16 %v433
        %v479 = vunpack.c.l.b16 %v434
        %v480 = vunpack.c.l.b16 %v435
        %v481 = vunpack.c.l.b16 %v436
        %v482 = vunpack.c.l.b16 %v437
        %v483 = vunpack.c.l.b16 %v438
        %v484 = vunpack.c.l.b16 %v439
        %v485 = vunpack.c.l.b16 %v440
        %v486 = vunpack.c.l.b16 %v441
        %v487 = vunpack.c.l.b16 %v442
        %v488 = vunpack.c.l.b16 %v443
        %v489 = vunpack.c.l.b16 %v444
        %v490 = vpack.c.b16 %v475, %v474
        %v491 = vpack.c.b16 %v477, %v476
        %v492 = vpack.c.b16 %v479, %v478
        %v493 = vpack.c.b16 %v481, %v480
        %v494 = vpack.c.b16 %v483, %v482
        %v495 = vpack.c.b16 %v485, %v484
        %v496 = vpack.c.b16 %v487, %v486
        %v497 = vpack.c.b16 %v489, %v488
        %506 = vmatprep.subr.bf16.mxu0 0
        %507 = vmatpush1.bf16.msra.mxu0 %v497
        %508 = vmatprep.subr.bf16.mxu0 0
        %509 = vmatpush1.bf16.msra.mxu0 %v496
        %510 = vmatprep.subr.bf16.mxu0 0
        %511 = vmatpush1.bf16.msra.mxu0 %v495
        %512 = vmatprep.subr.bf16.mxu0 0
        %513 = vmatpush1.bf16.msra.mxu0 %v494
        %514 = vmatprep.subr.bf16.mxu0 0
        %515 = vmatpush1.bf16.msra.mxu0 %v493
        %516 = vmatprep.subr.bf16.mxu0 0
        %517 = vmatpush1.bf16.msra.mxu0 %v492
        %518 = vmatprep.subr.bf16.mxu0 0
        %519 = vmatpush1.bf16.msra.mxu0 %v491
        %520 = vmatprep.subr.bf16.mxu0 0
        %521 = vmatpush1.bf16.msra.mxu0 %v490
        %522 = vmatprep.subr.bf16.mxu0 0
        %523 = vmatpush2.bf16.msra.mxu0 0
        %524 = vmatprep.subr.bf16.mxu0 0
        %525 = vmatpush2.bf16.msra.mxu0 0
        %526 = vmatprep.subr.bf16.mxu0 0
        %527 = vmatpush2.bf16.msra.mxu0 0
        %528 = vmatprep.subr.bf16.mxu0 0
        %529 = vmatpush2.bf16.msra.mxu0 0
        %530 = vmatprep.subr.bf16.mxu0 0
        %531 = vmatpush2.bf16.msra.mxu0 0
        %532 = vmatprep.subr.bf16.mxu0 0
        %533 = vmatpush2.bf16.msra.mxu0 0
        %534 = vmatprep.subr.bf16.mxu0 0
        %535 = vmatpush2.bf16.msra.mxu0 0
        %536 = vmatprep.subr.bf16.mxu0 0
        %537 = vmatpush2.bf16.msra.mxu0 0
        %538 = vmatprep.mubr.bf16.mxu0 0
        %539 = vmatmul.mubr.bf16.gmra.mxu0 %v456
        %v540 = vpop.f32.mrf.mxu0
        %v541 = vadd.f32 %v450, %v540
        %v542 = vpop.f32.mrf.mxu0
        %v543 = vpop.f32.mrf.mxu0
        %v544 = vadd.f32 %v450, %v543
        %v545 = vpop.f32.mrf.mxu0
        %546 = vdwg.mxu0
        %v547 = vmax.f32 %v541, 0.0
        %v548 = vmax.f32 %v544, 0.0
        %v549 = vpack.c.bf16 %v548, %v547
        %v551 = vunpack.c.l.b16 %v549
        %v552 = vunpack.c.h.b16 %v549
        %v553 = vpack.c.b16 %v551, %v551
        %v554 = vpack.c.b16 %v552, %v552
        %557 = vst [vmem:[#allocation2] sm:$0xf] %v553
        %558 = vst [vmem:[#allocation2 + $0x4] sm:$0xf] %v554
        %v559 = vld [vmem:[#allocation2] sm:$0xf]
        %v560 = vld [vmem:[#allocation2 + $0x4] sm:$0xf]
        %v561 = vld [vmem:[#allocation9] sm:$0xf]
        %v562 = vld [vmem:[#allocation9 + $0x4] sm:$0xf]
        %v563 = vld [vmem:[#allocation9 + $0x8] sm:$0xf]
        %v564 = vld [vmem:[#allocation9 + $0xc] sm:$0xf]
        %v565 = vld [vmem:[#allocation9 + $0x10] sm:$0xf]
        %v566 = vld [vmem:[#allocation9 + $0x14] sm:$0xf]
        %v567 = vld [vmem:[#allocation9 + $0x18] sm:$0xf]
        %v568 = vld [vmem:[#allocation9 + $0x1c] sm:$0xf]
        %v569 = vld [vmem:[#allocation9 + $0x20] sm:$0xf]
        %v570 = vld [vmem:[#allocation9 + $0x24] sm:$0xf]
        %v571 = vld [vmem:[#allocation9 + $0x28] sm:$0xf]
        %v572 = vld [vmem:[#allocation9 + $0x2c] sm:$0xf]
        %v573 = vld [vmem:[#allocation9 + $0x30] sm:$0xf]
        %v574 = vld [vmem:[#allocation9 + $0x34] sm:$0xf]
        %v575 = vld [vmem:[#allocation9 + $0x38] sm:$0xf]
        %v576 = vld [vmem:[#allocation9 + $0x3c] sm:$0xf]
        %v577 = vld [vmem:[%s6] sm:$0x1]
        %v579 = vlaneseq
        %v580 = vshrl.u32 %v579, 7
        %v581 = vsub.s32 0, %v580
        %v582 = vrot.slane %v577, %v581
        %v586 = vunpack.c.l.b16 %v559
        %v587 = vunpack.c.l.b16 %v560
        %v588 = vpack.c.b16 %v587, %v586
        %v606 = vunpack.c.l.b16 %v561
        %v607 = vunpack.c.l.b16 %v562
        %v608 = vunpack.c.l.b16 %v563
        %v609 = vunpack.c.l.b16 %v564
        %v610 = vunpack.c.l.b16 %v565
        %v611 = vunpack.c.l.b16 %v566
        %v612 = vunpack.c.l.b16 %v567
        %v613 = vunpack.c.l.b16 %v568
        %v614 = vunpack.c.l.b16 %v569
        %v615 = vunpack.c.l.b16 %v570
        %v616 = vunpack.c.l.b16 %v571
        %v617 = vunpack.c.l.b16 %v572
        %v618 = vunpack.c.l.b16 %v573
        %v619 = vunpack.c.l.b16 %v574
        %v620 = vunpack.c.l.b16 %v575
        %v621 = vunpack.c.l.b16 %v576
        %v622 = vpack.c.b16 %v607, %v606
        %v623 = vpack.c.b16 %v609, %v608
        %v624 = vpack.c.b16 %v611, %v610
        %v625 = vpack.c.b16 %v613, %v612
        %v626 = vpack.c.b16 %v615, %v614
        %v627 = vpack.c.b16 %v617, %v616
        %v628 = vpack.c.b16 %v619, %v618
        %v629 = vpack.c.b16 %v621, %v620
        %638 = vmatprep.subr.bf16.mxu0 0
        %639 = vmatpush1.bf16.msra.mxu0 %v629
        %640 = vmatprep.subr.bf16.mxu0 0
        %641 = vmatpush1.bf16.msra.mxu0 %v628
        %642 = vmatprep.subr.bf16.mxu0 0
        %643 = vmatpush1.bf16.msra.mxu0 %v627
        %644 = vmatprep.subr.bf16.mxu0 0
        %645 = vmatpush1.bf16.msra.mxu0 %v626
        %646 = vmatprep.subr.bf16.mxu0 0
        %647 = vmatpush1.bf16.msra.mxu0 %v625
        %648 = vmatprep.subr.bf16.mxu0 0
        %649 = vmatpush1.bf16.msra.mxu0 %v624
        %650 = vmatprep.subr.bf16.mxu0 0
        %651 = vmatpush1.bf16.msra.mxu0 %v623
        %652 = vmatprep.subr.bf16.mxu0 0
        %653 = vmatpush1.bf16.msra.mxu0 %v622
        %654 = vmatprep.subr.bf16.mxu0 0
        %655 = vmatpush2.bf16.msra.mxu0 0
        %656 = vmatprep.subr.bf16.mxu0 0
        %657 = vmatpush2.bf16.msra.mxu0 0
        %658 = vmatprep.subr.bf16.mxu0 0
        %659 = vmatpush2.bf16.msra.mxu0 0
        %660 = vmatprep.subr.bf16.mxu0 0
        %661 = vmatpush2.bf16.msra.mxu0 0
        %662 = vmatprep.subr.bf16.mxu0 0
        %663 = vmatpush2.bf16.msra.mxu0 0
        %664 = vmatprep.subr.bf16.mxu0 0
        %665 = vmatpush2.bf16.msra.mxu0 0
        %666 = vmatprep.subr.bf16.mxu0 0
        %667 = vmatpush2.bf16.msra.mxu0 0
        %668 = vmatprep.subr.bf16.mxu0 0
        %669 = vmatpush2.bf16.msra.mxu0 0
        %670 = vmatprep.mubr.bf16.mxu0 0
        %671 = vmatmul.mubr.bf16.gmra.mxu0 %v588
        %v672 = vpop.f32.mrf.mxu0
        %v673 = vadd.f32 %v582, %v672
        %v674 = vpop.f32.mrf.mxu0
        %v675 = vpop.f32.mrf.mxu0
        %v676 = vadd.f32 %v582, %v675
        %v677 = vpop.f32.mrf.mxu0
        %678 = vdwg.mxu0
        %679 = vst [vmem:[%s340] sm:$0xff] %v673
        %680 = vst [vmem:[%s340 + $0x8] sm:$0xff] %v676
        %s681 = sand.u32 %s186, 1
        %s682 = scalar_lea.sflag [#allocation5], %s681
        %s683 = sand.u32 %s186, 1
        %s684 = smul.addr %s683, 16
        %s685 = scalar_lea.vmem [#allocation11], %s684
        // Predicated region
        $region65: #{tpu_custom_call.1} parent=47 // pred_check
          %p686 = pneg %p196
        $region66: #{tpu_custom_call.1} parent=47 // pred_check_branch
          %688 = sbr.rel (%p686) target = $region68
        $region67: #{tpu_custom_call.1} parent=47 // pred_region
          %s689 = smul.u32 2, %s26
          %s691 = ssub.s32 256, 256
          %692 = vsyncadd %s682, %s691
          %s693 = smul.addr %s689, 128
          %s694 = scalar_lea.hbm %s7, %s693
          %s695 = sshll.u32 %s685, 4
          %s696 = int_to_ptr.vmem [resolvable:$true] %s695
          %701 = dma.vmem_to_hbm [thread:$0]  %s696, 256, %s694, %s682, 128, 128, 8
        $region68: #{tpu_custom_call.1} parent=47 // pred_fallthru
          _
      $region48: #{tpu_custom_call.1} parent=5 // pred_fallthru
        _
      %p702 = scmp.le.s32.totalorder 2, %s21
      // Predicated region
      $region69: #{tpu_custom_call.1} parent=5 // pred_check
        %p703 = pneg %p702
      $region70: #{tpu_custom_call.1} parent=5 // pred_check_branch
        %705 = sbr.rel (%p703) target = $region72
      $region71: #{tpu_custom_call.1} parent=5 // pred_region
        %s706 = ssub.s32 %s21, 2
        // Predicated region
        $region73: #{tpu_custom_call.1} parent=71 // pred_check
          %p707 = pneg %p202
        $region74: #{tpu_custom_call.1} parent=71 // pred_check_branch
          %709 = sbr.rel (%p707) target = $region76
        $region75: #{tpu_custom_call.1} parent=71 // pred_region
          %s710 = sand.u32 %s187, 1
          %s711 = scalar_lea.sflag [#allocation5], %s710
          %s712 = sand.u32 %s187, 1
          %s713 = smul.addr %s712, 16
          %s714 = scalar_lea.vmem [#allocation11], %s713
          %715 = dma.done %s711, 256
        $region76: #{tpu_custom_call.1} parent=71 // pred_fallthru
          _
      $region72: #{tpu_custom_call.1} parent=5 // pred_fallthru
        _
    $region6: #{tpu_custom_call.1} parent=1 // loop_footer
      %s25 = sadd.s32 1, %s21
    $region7: #{tpu_custom_call.1} parent=1 // loop_footer_branch
      %20 = sbr.rel target = $region3
    $region8: #{tpu_custom_call.1} parent=1 // loop_exit
      _
    %716 = vsyncpa [#allocation4], 1
    %s717 = scalar_lea.sflag [#allocation4], 1
    %718 = vsyncpa %s717, 1
    %719 = vsyncpa [#allocation7], 1
    %720 = vsyncpa [#allocation10], 1
    %721 = vsyncpa [#allocation5], 1
    %s722 = scalar_lea.sflag [#allocation5], 1
    %723 = vsyncpa %s722, 1

</llo_original>
